<compile_context>
chip_gen: v5e
topology: v5e:2x2
jax: 0.10.0
libtpu: 0.0.40
codegen_flags: <defaults>
</compile_context>

<pallas_src>
import functools

import jax
import jax.numpy as jnp
from jax.experimental import pallas as pl
from jax.experimental.pallas import tpu as pltpu

# ----------------------------- config (small) --------------------------------
VOCAB = 100
TYPE_VOCAB = 2
MAX_POS = 16
HIDDEN = 32
NUM_HEADS = 2
HEAD_DIM = HIDDEN // NUM_HEADS
INTERMEDIATE = 64
NUM_LAYERS = 2
SEQ = 8
BATCH = 2
LN_EPS = 1e-12
DTYPE = jnp.float32
WDTYPE = jnp.bfloat16  # MXU-operand dtype for the large weight matmuls


# ------------------------------ fused kernel ----------------------------------
def _fused_pairwise_bert_kernel(
    emb_ref, mask_ref, sel_ref,
    emb_g_ref, emb_b_ref,
    qkv_w_ref, qkv_b_ref,
    ao_w_ref, ao_b_ref,
    ln1_g_ref, ln1_b_ref,
    fi_w_ref, fi_b_ref,
    fo_w_ref, fo_b_ref,
    ln2_g_ref, ln2_b_ref,
    pool_w_ref, pool_b_ref,
    cls_wa_ref, cls_wb_ref, cls_bias_ref,
    out_ref,
    *, num_layers, num_heads, head_dim, pair_batch, eps):
  """Whole PairwiseBERT forward (minus embedding gathers) on VMEM-resident data.

  emb_ref:   (m, H)     summed word+pos+type embeddings, m = 2B*S token rows
  mask_ref:  (m, m)     combined additive attention bias (padding + block-diag)
  sel_ref:   (2B, m)    one-hot CLS-row selection matrix
  weights:   stacked on a leading layer axis; matmul weights are bf16
  out_ref:   (B, 1)     pairwise logits
  """
  scale = 1.0 / (head_dim ** 0.5)

  def layer_norm(v, g, b):
    mu = jnp.mean(v, axis=-1, keepdims=True)
    var = jnp.mean(jnp.square(v - mu), axis=-1, keepdims=True)
    return (v - mu) * jax.lax.rsqrt(var + eps) * g + b

  def bf16(v):
    return v.astype(jnp.bfloat16)

  # Embedding LayerNorm (f32).
  x = layer_norm(emb_ref[...].astype(jnp.float32), emb_g_ref[...], emb_b_ref[...])

  # Combined padding + cross-sequence attention bias, hoisted once for all
  # layers and heads (single VPU add per score tile below).
  mask = mask_ref[...]

  # NOTE: full unrolling is fine at 2 layers x 2 heads; switch to a layer grid
  # or lax.fori_loop over the stacked weights before scaling to bert-base.
  for li in range(num_layers):
    # ---- multi-head self attention -----------------------------------------
    # Single fused Q/K/V projection across q/k/v and heads: (m, 3*H), f32 acc.
    qkv = (jnp.dot(bf16(x), qkv_w_ref[li], preferred_element_type=jnp.float32)
           + qkv_b_ref[li])

    ctx_heads = []
    for h in range(num_heads):
      q = qkv[:, (0 * num_heads + h) * head_dim:(0 * num_heads + h + 1) * head_dim]
      k = qkv[:, (1 * num_heads + h) * head_dim:(1 * num_heads + h + 1) * head_dim]
      v = qkv[:, (2 * num_heads + h) * head_dim:(2 * num_heads + h + 1) * head_dim]

      # Flat masked (m, m) scores — one MXU pass per head, no batched einsums.
      s = jnp.einsum("qd,kd->qk", q * scale, k,
                     preferred_element_type=jnp.float32) + mask
      s = s - jnp.max(s, axis=-1, keepdims=True)
      p = jnp.exp(s)
      p = p * pl.reciprocal(jnp.sum(p, axis=-1, keepdims=True), approx=True)
      ctx_heads.append(jnp.dot(p, v, preferred_element_type=jnp.float32))

    ctx = jnp.concatenate(ctx_heads, axis=-1)                       # (m, H)
    # Single fused attention output projection across heads.
    attn = (jnp.dot(bf16(ctx), ao_w_ref[li], preferred_element_type=jnp.float32)
            + ao_b_ref[li])
    x = layer_norm(attn + x, ln1_g_ref[li], ln1_b_ref[li])

    # ---- feed-forward --------------------------------------------------------
    ff = (jnp.dot(bf16(x), fi_w_ref[li], preferred_element_type=jnp.float32)
          + fi_b_ref[li])
    ff = jax.nn.gelu(ff, approximate=True)  # TODO(synk): exact erf GELU in HF BERT
    ff = (jnp.dot(bf16(ff), fo_w_ref[li], preferred_element_type=jnp.float32)
          + fo_b_ref[li])
    x = layer_norm(ff + x, ln2_g_ref[li], ln2_b_ref[li])

  # ---- pooler on CLS tokens + pairwise classifier (fused epilogue) -----------
  # One CLS-selection matmul for all 2B sequences, one pooler matmul, one tanh.
  cls_tok = jnp.dot(sel_ref[...], x, preferred_element_type=jnp.float32)  # (2B, H)
  pooled = jnp.tanh(
      jnp.dot(bf16(cls_tok), pool_w_ref[...],
              preferred_element_type=jnp.float32) + pool_b_ref[...])       # (2B, H)

  pooled_a = pooled[:pair_batch]     # sequences 0 of every pair
  pooled_b = pooled[pair_batch:]     # sequences 1 of every pair

  # classifier([pooled_a | pooled_b]) == pooled_a @ W[:H] + pooled_b @ W[H:] + b
  logits = (jnp.dot(pooled_a, cls_wa_ref[...], preferred_element_type=jnp.float32)
            + jnp.dot(pooled_b, cls_wb_ref[...], preferred_element_type=jnp.float32)
            + cls_bias_ref[...])
  out_ref[...] = logits.astype(out_ref.dtype)


# ------------------------------ parameter init --------------------------------
def build_params(key):
  ks = jax.random.split(key, 16)

  def w(k, *shape, dtype=DTYPE):
    return (jax.random.normal(k, shape, jnp.float32) * 0.02).astype(dtype)

  return {
      "word_emb": w(ks[0], VOCAB, HIDDEN),
      "pos_emb": w(ks[1], MAX_POS, HIDDEN),
      "type_emb": w(ks[2], TYPE_VOCAB, HIDDEN),
      "emb_ln_g": jnp.ones((1, HIDDEN), DTYPE),
      "emb_ln_b": jnp.zeros((1, HIDDEN), DTYPE),
      # Per-layer weights stacked on a leading layer axis.  QKV is fused across
      # the q/k/v axis and the head axis: column block (qkv*NH + h)*HD is head h
      # of projection qkv (0=Q, 1=K, 2=V).  Matmul weights stored in bf16.
      "qkv_w": w(ks[3], NUM_LAYERS, HIDDEN, 3 * NUM_HEADS * HEAD_DIM, dtype=WDTYPE),
      "qkv_b": w(ks[4], NUM_LAYERS, 1, 3 * NUM_HEADS * HEAD_DIM),
      "ao_w": w(ks[5], NUM_LAYERS, NUM_HEADS * HEAD_DIM, HIDDEN, dtype=WDTYPE),
      "ao_b": w(ks[6], NUM_LAYERS, 1, HIDDEN),
      "ln1_g": jnp.ones((NUM_LAYERS, 1, HIDDEN), DTYPE),
      "ln1_b": jnp.zeros((NUM_LAYERS, 1, HIDDEN), DTYPE),
      "fi_w": w(ks[7], NUM_LAYERS, HIDDEN, INTERMEDIATE, dtype=WDTYPE),
      "fi_b": w(ks[8], NUM_LAYERS, 1, INTERMEDIATE),
      "fo_w": w(ks[9], NUM_LAYERS, INTERMEDIATE, HIDDEN, dtype=WDTYPE),
      "fo_b": w(ks[10], NUM_LAYERS, 1, HIDDEN),
      "ln2_g": jnp.ones((NUM_LAYERS, 1, HIDDEN), DTYPE),
      "ln2_b": jnp.zeros((NUM_LAYERS, 1, HIDDEN), DTYPE),
      "pool_w": w(ks[11], HIDDEN, HIDDEN, dtype=WDTYPE),
      "pool_b": w(ks[12], 1, HIDDEN),
      "cls_w": w(ks[13], 2 * HIDDEN, 1),
      "cls_b": w(ks[14], 1, 1),
  }


# ------------------------------- forward wrapper -------------------------------
def pairwise_bert_forward(params, input_ids, attention_mask, token_type_ids):
  """input_ids/attention_mask/token_type_ids: (B, 2, S) int32 -> logits (B, 1)."""
  B, n_pair, S = input_ids.shape
  n_seq = n_pair * B
  m = n_seq * S

  # Flatten the pair axis FIRST so rows [0:B] are sequence 0 ("a") and rows
  # [B:2B] are sequence 1 ("b"): one encoder pass over all 2B sequences.
  ids = input_ids.transpose(1, 0, 2).reshape(n_seq, S)
  ttids = token_type_ids.transpose(1, 0, 2).reshape(n_seq, S)
  amask = attention_mask.transpose(1, 0, 2).reshape(n_seq, S)

  # Embedding gathers are the only plain-JAX glue.
  word = jnp.take(params["word_emb"], ids, axis=0)            # (2B, S, H)
  pos = params["pos_emb"][:S][None, :, :]                     # (1, S, H)
  typ = jnp.take(params["type_emb"], ttids, axis=0)           # (2B, S, H)
  emb = (word + pos + typ).reshape(m, HIDDEN)                 # (2B*S, H)

  # Combined additive attention bias, precomputed ONCE (lane-dense (m, m)):
  # 0 where query & key are in the same sequence and the key is not padding,
  # -1e9 otherwise (forbids cross-sequence attention in the flattened layout).
  seq_id = jnp.arange(m, dtype=jnp.int32) // S
  same_seq = seq_id[:, None] == seq_id[None, :]
  key_ok = (amask.reshape(m) > 0)[None, :]
  attn_bias = jnp.where(same_seq & key_ok, 0.0, -1e9).astype(DTYPE)   # (m, m)

  # CLS-row selection matrix: row r picks token r*S (CLS of sequence r).
  sel = jax.nn.one_hot(jnp.arange(n_seq) * S, m, dtype=DTYPE)          # (2B, m)

  kern = functools.partial(
      _fused_pairwise_bert_kernel,
      num_layers=NUM_LAYERS, num_heads=NUM_HEADS, head_dim=HEAD_DIM,
      pair_batch=B, eps=LN_EPS)

  vmem = pl.BlockSpec(memory_space=pltpu.MemorySpace.VMEM)
  inputs = (
      emb, attn_bias, sel,
      params["emb_ln_g"], params["emb_ln_b"],
      params["qkv_w"], params["qkv_b"],
      params["ao_w"], params["ao_b"],
      params["ln1_g"], params["ln1_b"],
      params["fi_w"], params["fi_b"],
      params["fo_w"], params["fo_b"],
      params["ln2_g"], params["ln2_b"],
      params["pool_w"], params["pool_b"],
      params["cls_w"][:HIDDEN], params["cls_w"][HIDDEN:], params["cls_b"],
  )

  logits = pl.pallas_call(
      kern,
      out_shape=jax.ShapeDtypeStruct((B, 1), DTYPE),
      in_specs=[vmem] * len(inputs),
      out_specs=pl.BlockSpec(memory_space=pltpu.MemorySpace.VMEM),
  )(*inputs)
  return logits


# ----------------------------------- main --------------------------------------
if __name__ == "__main__":
  key = jax.random.PRNGKey(0)
  kp, kid, ktt = jax.random.split(key, 3)

  params = build_params(kp)

  input_ids = jax.random.randint(kid, (BATCH, 2, SEQ), 0, VOCAB, jnp.int32)
  token_type_ids = jax.random.randint(ktt, (BATCH, 2, SEQ), 0, TYPE_VOCAB,
                                      jnp.int32)
  # Mask out the last two tokens of the second example to exercise masking.
  attention_mask = jnp.ones((BATCH, 2, SEQ), jnp.int32)
  attention_mask = attention_mask.at[1, :, SEQ - 2:].set(0)

  fwd = jax.jit(pairwise_bert_forward)
  logits = fwd(params, input_ids, attention_mask, token_type_ids)
  jax.block_until_ready(logits)

  assert logits.shape == (BATCH, 1), logits.shape
  assert bool(jnp.all(jnp.isfinite(logits)))
  print("KERNEL_OK")
</pallas_src>

<mosaic_0001>
module attributes {stable_mosaic.version = 11 : i64} {
  func.func @_fused_pairwise_bert_kernel(%arg0: memref<32x32xf32, #tpu.memory_space<vmem>>, %arg1: memref<32x32xf32, #tpu.memory_space<vmem>>, %arg2: memref<4x32xf32, #tpu.memory_space<vmem>>, %arg3: memref<1x32xf32, #tpu.memory_space<vmem>>, %arg4: memref<1x32xf32, #tpu.memory_space<vmem>>, %arg5: memref<2x32x96xbf16, #tpu.memory_space<vmem>>, %arg6: memref<2x1x96xf32, #tpu.memory_space<vmem>>, %arg7: memref<2x32x32xbf16, #tpu.memory_space<vmem>>, %arg8: memref<2x1x32xf32, #tpu.memory_space<vmem>>, %arg9: memref<2x1x32xf32, #tpu.memory_space<vmem>>, %arg10: memref<2x1x32xf32, #tpu.memory_space<vmem>>, %arg11: memref<2x32x64xbf16, #tpu.memory_space<vmem>>, %arg12: memref<2x1x64xf32, #tpu.memory_space<vmem>>, %arg13: memref<2x64x32xbf16, #tpu.memory_space<vmem>>, %arg14: memref<2x1x32xf32, #tpu.memory_space<vmem>>, %arg15: memref<2x1x32xf32, #tpu.memory_space<vmem>>, %arg16: memref<2x1x32xf32, #tpu.memory_space<vmem>>, %arg17: memref<32x32xbf16, #tpu.memory_space<vmem>>, %arg18: memref<1x32xf32, #tpu.memory_space<vmem>>, %arg19: memref<32x1xf32, #tpu.memory_space<vmem>>, %arg20: memref<32x1xf32, #tpu.memory_space<vmem>>, %arg21: memref<1x1xf32, #tpu.memory_space<vmem>>, %arg22: memref<2x1xf32, #tpu.memory_space<vmem>>) attributes {dimension_semantics = [], scalar_prefetch = 0 : i64, scratch_operands = 0 : i64, tpu.core_type = #tpu.core_type<tc>} {
    %c0 = arith.constant 0 : index
    %c0_0 = arith.constant 0 : index
    %0 = vector.load %arg0[%c0, %c0_0] : memref<32x32xf32, #tpu.memory_space<vmem>>, vector<32x32xf32>
    %c0_1 = arith.constant 0 : index
    %c0_2 = arith.constant 0 : index
    %1 = vector.load %arg3[%c0_1, %c0_2] : memref<1x32xf32, #tpu.memory_space<vmem>>, vector<1x32xf32>
    %c0_3 = arith.constant 0 : index
    %c0_4 = arith.constant 0 : index
    %2 = vector.load %arg4[%c0_3, %c0_4] : memref<1x32xf32, #tpu.memory_space<vmem>>, vector<1x32xf32>
    %cst = arith.constant dense<0.000000e+00> : vector<32xf32>
    %3 = vector.multi_reduction <add>, %0, %cst [1] : vector<32x32xf32> to vector<32xf32>
    %4 = vector.shape_cast %3 : vector<32xf32> to vector<32x1xf32>
    %cst_5 = arith.constant 3.200000e+01 : f32
    %5 = vector.broadcast %cst_5 : f32 to vector<32x1xf32>
    %6 = arith.divf %4, %5 : vector<32x1xf32>
    %7 = vector.broadcast %6 : vector<32x1xf32> to vector<32x32xf32>
    %8 = arith.subf %0, %7 : vector<32x32xf32>
    %9 = arith.mulf %8, %8 : vector<32x32xf32>
    %cst_6 = arith.constant dense<0.000000e+00> : vector<32xf32>
    %10 = vector.multi_reduction <add>, %9, %cst_6 [1] : vector<32x32xf32> to vector<32xf32>
    %11 = vector.shape_cast %10 : vector<32xf32> to vector<32x1xf32>
    %cst_7 = arith.constant 3.200000e+01 : f32
    %12 = vector.broadcast %cst_7 : f32 to vector<32x1xf32>
    %13 = arith.divf %11, %12 : vector<32x1xf32>
    %14 = vector.broadcast %6 : vector<32x1xf32> to vector<32x32xf32>
    %15 = arith.subf %0, %14 : vector<32x32xf32>
    %cst_8 = arith.constant 9.99999996E-13 : f32
    %16 = vector.broadcast %cst_8 : f32 to vector<32x1xf32>
    %17 = arith.addf %13, %16 : vector<32x1xf32>
    %18 = math.rsqrt %17 : vector<32x1xf32>
    %19 = vector.broadcast %18 : vector<32x1xf32> to vector<32x32xf32>
    %20 = arith.mulf %15, %19 : vector<32x32xf32>
    %21 = vector.broadcast %1 : vector<1x32xf32> to vector<32x32xf32>
    %22 = arith.mulf %20, %21 : vector<32x32xf32>
    %23 = vector.broadcast %2 : vector<1x32xf32> to vector<32x32xf32>
    %24 = arith.addf %22, %23 : vector<32x32xf32>
    %c0_9 = arith.constant 0 : index
    %c0_10 = arith.constant 0 : index
    %25 = vector.load %arg1[%c0_9, %c0_10] : memref<32x32xf32, #tpu.memory_space<vmem>>, vector<32x32xf32>
    %26 = arith.truncf %24 : vector<32x32xf32> to vector<32x32xbf16>
    %c0_11 = arith.constant 0 : index
    %c0_12 = arith.constant 0 : index
    %c0_13 = arith.constant 0 : index
    %27 = vector.load %arg5[%c0_11, %c0_12, %c0_13] : memref<2x32x96xbf16, #tpu.memory_space<vmem>>, vector<1x32x96xbf16>
    %28 = vector.shape_cast %27 : vector<1x32x96xbf16> to vector<32x96xbf16>
    %cst_14 = arith.constant dense<0.000000e+00> : vector<32x96xf32>
    %29 = tpu.matmul %26, %28, %cst_14 {dimension_numbers = #tpu.dot_dimension_numbers<[1], [0], [0], [1], [0, 0, 1, 1], [], []>} : vector<32x32xbf16>, vector<32x96xbf16>, vector<32x96xf32> -> vector<32x96xf32>
    %c0_15 = arith.constant 0 : index
    %c0_16 = arith.constant 0 : index
    %c0_17 = arith.constant 0 : index
    %30 = vector.load %arg6[%c0_15, %c0_16, %c0_17] : memref<2x1x96xf32, #tpu.memory_space<vmem>>, vector<1x1x96xf32>
    %31 = vector.shape_cast %30 : vector<1x1x96xf32> to vector<1x96xf32>
    %32 = vector.broadcast %31 : vector<1x96xf32> to vector<32x96xf32>
    %33 = arith.addf %29, %32 : vector<32x96xf32>
    %34 = vector.extract_strided_slice %33 {offsets = [0, 0], sizes = [32, 16], strides = [1, 1]} : vector<32x96xf32> to vector<32x16xf32>
    %35 = vector.extract_strided_slice %33 {offsets = [0, 32], sizes = [32, 16], strides = [1, 1]} : vector<32x96xf32> to vector<32x16xf32>
    %36 = vector.extract_strided_slice %33 {offsets = [0, 64], sizes = [32, 16], strides = [1, 1]} : vector<32x96xf32> to vector<32x16xf32>
    %cst_18 = arith.constant 2.500000e-01 : f32
    %37 = vector.broadcast %cst_18 : f32 to vector<32x16xf32>
    %38 = arith.mulf %34, %37 : vector<32x16xf32>
    "tpu.trace_start"() <{level = 10 : i32, message = "qd,kd->qk"}> : () -> ()
    %cst_19 = arith.constant dense<0.000000e+00> : vector<32x32xf32>
    %39 = tpu.matmul %38, %35, %cst_19 {dimension_numbers = #tpu.dot_dimension_numbers<[1], [1], [0], [0], [0, 0, 1, 0], [], []>} : vector<32x16xf32>, vector<32x16xf32>, vector<32x32xf32> -> vector<32x32xf32>
    "tpu.trace_stop"() : () -> ()
    %40 = arith.addf %39, %25 : vector<32x32xf32>
    %cst_20 = arith.constant dense<0xFF800000> : vector<32xf32>
    %41 = vector.multi_reduction <maximumf>, %40, %cst_20 [1] : vector<32x32xf32> to vector<32xf32>
    %42 = vector.shape_cast %41 : vector<32xf32> to vector<32x1xf32>
    %43 = vector.broadcast %42 : vector<32x1xf32> to vector<32x32xf32>
    %44 = arith.subf %40, %43 : vector<32x32xf32>
    %45 = math.exp %44 : vector<32x32xf32>
    %cst_21 = arith.constant dense<0.000000e+00> : vector<32xf32>
    %46 = vector.multi_reduction <add>, %45, %cst_21 [1] : vector<32x32xf32> to vector<32xf32>
    %47 = vector.shape_cast %46 : vector<32xf32> to vector<32x1xf32>
    %48 = tpu.reciprocal %47 {approx = true} : vector<32x1xf32> -> vector<32x1xf32>
    %49 = vector.broadcast %48 : vector<32x1xf32> to vector<32x32xf32>
    %50 = arith.mulf %45, %49 : vector<32x32xf32>
    %cst_22 = arith.constant dense<0.000000e+00> : vector<32x16xf32>
    %51 = tpu.matmul %50, %36, %cst_22 {dimension_numbers = #tpu.dot_dimension_numbers<[1], [0], [0], [1], [0, 0, 1, 1], [], []>} : vector<32x32xf32>, vector<32x16xf32>, vector<32x16xf32> -> vector<32x16xf32>
    %52 = vector.extract_strided_slice %33 {offsets = [0, 16], sizes = [32, 16], strides = [1, 1]} : vector<32x96xf32> to vector<32x16xf32>
    %53 = vector.extract_strided_slice %33 {offsets = [0, 48], sizes = [32, 16], strides = [1, 1]} : vector<32x96xf32> to vector<32x16xf32>
    %54 = vector.extract_strided_slice %33 {offsets = [0, 80], sizes = [32, 16], strides = [1, 1]} : vector<32x96xf32> to vector<32x16xf32>
    %cst_23 = arith.constant 2.500000e-01 : f32
    %55 = vector.broadcast %cst_23 : f32 to vector<32x16xf32>
    %56 = arith.mulf %52, %55 : vector<32x16xf32>
    "tpu.trace_start"() <{level = 10 : i32, message = "qd,kd->qk"}> : () -> ()
    %cst_24 = arith.constant dense<0.000000e+00> : vector<32x32xf32>
    %57 = tpu.matmul %56, %53, %cst_24 {dimension_numbers = #tpu.dot_dimension_numbers<[1], [1], [0], [0], [0, 0, 1, 0], [], []>} : vector<32x16xf32>, vector<32x16xf32>, vector<32x32xf32> -> vector<32x32xf32>
    "tpu.trace_stop"() : () -> ()
    %58 = arith.addf %57, %25 : vector<32x32xf32>
    %cst_25 = arith.constant dense<0xFF800000> : vector<32xf32>
    %59 = vector.multi_reduction <maximumf>, %58, %cst_25 [1] : vector<32x32xf32> to vector<32xf32>
    %60 = vector.shape_cast %59 : vector<32xf32> to vector<32x1xf32>
    %61 = vector.broadcast %60 : vector<32x1xf32> to vector<32x32xf32>
    %62 = arith.subf %58, %61 : vector<32x32xf32>
    %63 = math.exp %62 : vector<32x32xf32>
    %cst_26 = arith.constant dense<0.000000e+00> : vector<32xf32>
    %64 = vector.multi_reduction <add>, %63, %cst_26 [1] : vector<32x32xf32> to vector<32xf32>
    %65 = vector.shape_cast %64 : vector<32xf32> to vector<32x1xf32>
    %66 = tpu.reciprocal %65 {approx = true} : vector<32x1xf32> -> vector<32x1xf32>
    %67 = vector.broadcast %66 : vector<32x1xf32> to vector<32x32xf32>
    %68 = arith.mulf %63, %67 : vector<32x32xf32>
    %cst_27 = arith.constant dense<0.000000e+00> : vector<32x16xf32>
    %69 = tpu.matmul %68, %54, %cst_27 {dimension_numbers = #tpu.dot_dimension_numbers<[1], [0], [0], [1], [0, 0, 1, 1], [], []>} : vector<32x32xf32>, vector<32x16xf32>, vector<32x16xf32> -> vector<32x16xf32>
    %70 = tpu.concatenate %51, %69 in 1 : vector<32x16xf32>, vector<32x16xf32> -> vector<32x32xf32>
    %71 = arith.truncf %70 : vector<32x32xf32> to vector<32x32xbf16>
    %c0_28 = arith.constant 0 : index
    %c0_29 = arith.constant 0 : index
    %c0_30 = arith.constant 0 : index
    %72 = vector.load %arg7[%c0_28, %c0_29, %c0_30] : memref<2x32x32xbf16, #tpu.memory_space<vmem>>, vector<1x32x32xbf16>
    %73 = vector.shape_cast %72 : vector<1x32x32xbf16> to vector<32x32xbf16>
    %cst_31 = arith.constant dense<0.000000e+00> : vector<32x32xf32>
    %74 = tpu.matmul %71, %73, %cst_31 {dimension_numbers = #tpu.dot_dimension_numbers<[1], [0], [0], [1], [0, 0, 1, 1], [], []>} : vector<32x32xbf16>, vector<32x32xbf16>, vector<32x32xf32> -> vector<32x32xf32>
    %c0_32 = arith.constant 0 : index
    %c0_33 = arith.constant 0 : index
    %c0_34 = arith.constant 0 : index
    %75 = vector.load %arg8[%c0_32, %c0_33, %c0_34] : memref<2x1x32xf32, #tpu.memory_space<vmem>>, vector<1x1x32xf32>
    %76 = vector.shape_cast %75 : vector<1x1x32xf32> to vector<1x32xf32>
    %77 = vector.broadcast %76 : vector<1x32xf32> to vector<32x32xf32>
    %78 = arith.addf %74, %77 : vector<32x32xf32>
    %79 = arith.addf %78, %24 : vector<32x32xf32>
    %c0_35 = arith.constant 0 : index
    %c0_36 = arith.constant 0 : index
    %c0_37 = arith.constant 0 : index
    %80 = vector.load %arg9[%c0_35, %c0_36, %c0_37] : memref<2x1x32xf32, #tpu.memory_space<vmem>>, vector<1x1x32xf32>
    %81 = vector.shape_cast %80 : vector<1x1x32xf32> to vector<1x32xf32>
    %c0_38 = arith.constant 0 : index
    %c0_39 = arith.constant 0 : index
    %c0_40 = arith.constant 0 : index
    %82 = vector.load %arg10[%c0_38, %c0_39, %c0_40] : memref<2x1x32xf32, #tpu.memory_space<vmem>>, vector<1x1x32xf32>
    %83 = vector.shape_cast %82 : vector<1x1x32xf32> to vector<1x32xf32>
    %cst_41 = arith.constant dense<0.000000e+00> : vector<32xf32>
    %84 = vector.multi_reduction <add>, %79, %cst_41 [1] : vector<32x32xf32> to vector<32xf32>
    %85 = vector.shape_cast %84 : vector<32xf32> to vector<32x1xf32>
    %cst_42 = arith.constant 3.200000e+01 : f32
    %86 = vector.broadcast %cst_42 : f32 to vector<32x1xf32>
    %87 = arith.divf %85, %86 : vector<32x1xf32>
    %88 = vector.broadcast %87 : vector<32x1xf32> to vector<32x32xf32>
    %89 = arith.subf %79, %88 : vector<32x32xf32>
    %90 = arith.mulf %89, %89 : vector<32x32xf32>
    %cst_43 = arith.constant dense<0.000000e+00> : vector<32xf32>
    %91 = vector.multi_reduction <add>, %90, %cst_43 [1] : vector<32x32xf32> to vector<32xf32>
    %92 = vector.shape_cast %91 : vector<32xf32> to vector<32x1xf32>
    %cst_44 = arith.constant 3.200000e+01 : f32
    %93 = vector.broadcast %cst_44 : f32 to vector<32x1xf32>
    %94 = arith.divf %92, %93 : vector<32x1xf32>
    %95 = vector.broadcast %87 : vector<32x1xf32> to vector<32x32xf32>
    %96 = arith.subf %79, %95 : vector<32x32xf32>
    %cst_45 = arith.constant 9.99999996E-13 : f32
    %97 = vector.broadcast %cst_45 : f32 to vector<32x1xf32>
    %98 = arith.addf %94, %97 : vector<32x1xf32>
    %99 = math.rsqrt %98 : vector<32x1xf32>
    %100 = vector.broadcast %99 : vector<32x1xf32> to vector<32x32xf32>
    %101 = arith.mulf %96, %100 : vector<32x32xf32>
    %102 = vector.broadcast %81 : vector<1x32xf32> to vector<32x32xf32>
    %103 = arith.mulf %101, %102 : vector<32x32xf32>
    %104 = vector.broadcast %83 : vector<1x32xf32> to vector<32x32xf32>
    %105 = arith.addf %103, %104 : vector<32x32xf32>
    %106 = arith.truncf %105 : vector<32x32xf32> to vector<32x32xbf16>
    %c0_46 = arith.constant 0 : index
    %c0_47 = arith.constant 0 : index
    %c0_48 = arith.constant 0 : index
    %107 = vector.load %arg11[%c0_46, %c0_47, %c0_48] : memref<2x32x64xbf16, #tpu.memory_space<vmem>>, vector<1x32x64xbf16>
    %108 = vector.shape_cast %107 : vector<1x32x64xbf16> to vector<32x64xbf16>
    %cst_49 = arith.constant dense<0.000000e+00> : vector<32x64xf32>
    %109 = tpu.matmul %106, %108, %cst_49 {dimension_numbers = #tpu.dot_dimension_numbers<[1], [0], [0], [1], [0, 0, 1, 1], [], []>} : vector<32x32xbf16>, vector<32x64xbf16>, vector<32x64xf32> -> vector<32x64xf32>
    %c0_50 = arith.constant 0 : index
    %c0_51 = arith.constant 0 : index
    %c0_52 = arith.constant 0 : index
    %110 = vector.load %arg12[%c0_50, %c0_51, %c0_52] : memref<2x1x64xf32, #tpu.memory_space<vmem>>, vector<1x1x64xf32>
    %111 = vector.shape_cast %110 : vector<1x1x64xf32> to vector<1x64xf32>
    %112 = vector.broadcast %111 : vector<1x64xf32> to vector<32x64xf32>
    %113 = arith.addf %109, %112 : vector<32x64xf32>
    %114 = arith.mulf %113, %113 : vector<32x64xf32>
    %115 = arith.mulf %113, %114 : vector<32x64xf32>
    %cst_53 = arith.constant 4.471500e-02 : f32
    %116 = vector.broadcast %cst_53 : f32 to vector<32x64xf32>
    %117 = arith.mulf %116, %115 : vector<32x64xf32>
    %118 = arith.addf %113, %117 : vector<32x64xf32>
    %cst_54 = arith.constant 0.797884583 : f32
    %119 = vector.broadcast %cst_54 : f32 to vector<32x64xf32>
    %120 = arith.mulf %119, %118 : vector<32x64xf32>
    %121 = math.tanh %120 : vector<32x64xf32>
    %cst_55 = arith.constant 1.000000e+00 : f32
    %122 = vector.broadcast %cst_55 : f32 to vector<32x64xf32>
    %123 = arith.addf %122, %121 : vector<32x64xf32>
    %cst_56 = arith.constant 5.000000e-01 : f32
    %124 = vector.broadcast %cst_56 : f32 to vector<32x64xf32>
    %125 = arith.mulf %124, %123 : vector<32x64xf32>
    %126 = arith.mulf %113, %125 : vector<32x64xf32>
    %127 = arith.truncf %126 : vector<32x64xf32> to vector<32x64xbf16>
    %c0_57 = arith.constant 0 : index
    %c0_58 = arith.constant 0 : index
    %c0_59 = arith.constant 0 : index
    %128 = vector.load %arg13[%c0_57, %c0_58, %c0_59] : memref<2x64x32xbf16, #tpu.memory_space<vmem>>, vector<1x64x32xbf16>
    %129 = vector.shape_cast %128 : vector<1x64x32xbf16> to vector<64x32xbf16>
    %cst_60 = arith.constant dense<0.000000e+00> : vector<32x32xf32>
    %130 = tpu.matmul %127, %129, %cst_60 {dimension_numbers = #tpu.dot_dimension_numbers<[1], [0], [0], [1], [0, 0, 1, 1], [], []>} : vector<32x64xbf16>, vector<64x32xbf16>, vector<32x32xf32> -> vector<32x32xf32>
    %c0_61 = arith.constant 0 : index
    %c0_62 = arith.constant 0 : index
    %c0_63 = arith.constant 0 : index
    %131 = vector.load %arg14[%c0_61, %c0_62, %c0_63] : memref<2x1x32xf32, #tpu.memory_space<vmem>>, vector<1x1x32xf32>
    %132 = vector.shape_cast %131 : vector<1x1x32xf32> to vector<1x32xf32>
    %133 = vector.broadcast %132 : vector<1x32xf32> to vector<32x32xf32>
    %134 = arith.addf %130, %133 : vector<32x32xf32>
    %135 = arith.addf %134, %105 : vector<32x32xf32>
    %c0_64 = arith.constant 0 : index
    %c0_65 = arith.constant 0 : index
    %c0_66 = arith.constant 0 : index
    %136 = vector.load %arg15[%c0_64, %c0_65, %c0_66] : memref<2x1x32xf32, #tpu.memory_space<vmem>>, vector<1x1x32xf32>
    %137 = vector.shape_cast %136 : vector<1x1x32xf32> to vector<1x32xf32>
    %c0_67 = arith.constant 0 : index
    %c0_68 = arith.constant 0 : index
    %c0_69 = arith.constant 0 : index
    %138 = vector.load %arg16[%c0_67, %c0_68, %c0_69] : memref<2x1x32xf32, #tpu.memory_space<vmem>>, vector<1x1x32xf32>
    %139 = vector.shape_cast %138 : vector<1x1x32xf32> to vector<1x32xf32>
    %cst_70 = arith.constant dense<0.000000e+00> : vector<32xf32>
    %140 = vector.multi_reduction <add>, %135, %cst_70 [1] : vector<32x32xf32> to vector<32xf32>
    %141 = vector.shape_cast %140 : vector<32xf32> to vector<32x1xf32>
    %cst_71 = arith.constant 3.200000e+01 : f32
    %142 = vector.broadcast %cst_71 : f32 to vector<32x1xf32>
    %143 = arith.divf %141, %142 : vector<32x1xf32>
    %144 = vector.broadcast %143 : vector<32x1xf32> to vector<32x32xf32>
    %145 = arith.subf %135, %144 : vector<32x32xf32>
    %146 = arith.mulf %145, %145 : vector<32x32xf32>
    %cst_72 = arith.constant dense<0.000000e+00> : vector<32xf32>
    %147 = vector.multi_reduction <add>, %146, %cst_72 [1] : vector<32x32xf32> to vector<32xf32>
    %148 = vector.shape_cast %147 : vector<32xf32> to vector<32x1xf32>
    %cst_73 = arith.constant 3.200000e+01 : f32
    %149 = vector.broadcast %cst_73 : f32 to vector<32x1xf32>
    %150 = arith.divf %148, %149 : vector<32x1xf32>
    %151 = vector.broadcast %143 : vector<32x1xf32> to vector<32x32xf32>
    %152 = arith.subf %135, %151 : vector<32x32xf32>
    %cst_74 = arith.constant 9.99999996E-13 : f32
    %153 = vector.broadcast %cst_74 : f32 to vector<32x1xf32>
    %154 = arith.addf %150, %153 : vector<32x1xf32>
    %155 = math.rsqrt %154 : vector<32x1xf32>
    %156 = vector.broadcast %155 : vector<32x1xf32> to vector<32x32xf32>
    %157 = arith.mulf %152, %156 : vector<32x32xf32>
    %158 = vector.broadcast %137 : vector<1x32xf32> to vector<32x32xf32>
    %159 = arith.mulf %157, %158 : vector<32x32xf32>
    %160 = vector.broadcast %139 : vector<1x32xf32> to vector<32x32xf32>
    %161 = arith.addf %159, %160 : vector<32x32xf32>
    %162 = arith.truncf %161 : vector<32x32xf32> to vector<32x32xbf16>
    %c1 = arith.constant 1 : index
    %c0_75 = arith.constant 0 : index
    %c0_76 = arith.constant 0 : index
    %163 = vector.load %arg5[%c1, %c0_75, %c0_76] : memref<2x32x96xbf16, #tpu.memory_space<vmem>>, vector<1x32x96xbf16>
    %164 = vector.shape_cast %163 : vector<1x32x96xbf16> to vector<32x96xbf16>
    %cst_77 = arith.constant dense<0.000000e+00> : vector<32x96xf32>
    %165 = tpu.matmul %162, %164, %cst_77 {dimension_numbers = #tpu.dot_dimension_numbers<[1], [0], [0], [1], [0, 0, 1, 1], [], []>} : vector<32x32xbf16>, vector<32x96xbf16>, vector<32x96xf32> -> vector<32x96xf32>
    %c1_78 = arith.constant 1 : index
    %c0_79 = arith.constant 0 : index
    %c0_80 = arith.constant 0 : index
    %166 = vector.load %arg6[%c1_78, %c0_79, %c0_80] : memref<2x1x96xf32, #tpu.memory_space<vmem>>, vector<1x1x96xf32>
    %167 = vector.shape_cast %166 : vector<1x1x96xf32> to vector<1x96xf32>
    %168 = vector.broadcast %167 : vector<1x96xf32> to vector<32x96xf32>
    %169 = arith.addf %165, %168 : vector<32x96xf32>
    %170 = vector.extract_strided_slice %169 {offsets = [0, 0], sizes = [32, 16], strides = [1, 1]} : vector<32x96xf32> to vector<32x16xf32>
    %171 = vector.extract_strided_slice %169 {offsets = [0, 32], sizes = [32, 16], strides = [1, 1]} : vector<32x96xf32> to vector<32x16xf32>
    %172 = vector.extract_strided_slice %169 {offsets = [0, 64], sizes = [32, 16], strides = [1, 1]} : vector<32x96xf32> to vector<32x16xf32>
    %cst_81 = arith.constant 2.500000e-01 : f32
    %173 = vector.broadcast %cst_81 : f32 to vector<32x16xf32>
    %174 = arith.mulf %170, %173 : vector<32x16xf32>
    "tpu.trace_start"() <{level = 10 : i32, message = "qd,kd->qk"}> : () -> ()
    %cst_82 = arith.constant dense<0.000000e+00> : vector<32x32xf32>
    %175 = tpu.matmul %174, %171, %cst_82 {dimension_numbers = #tpu.dot_dimension_numbers<[1], [1], [0], [0], [0, 0, 1, 0], [], []>} : vector<32x16xf32>, vector<32x16xf32>, vector<32x32xf32> -> vector<32x32xf32>
    "tpu.trace_stop"() : () -> ()
    %176 = arith.addf %175, %25 : vector<32x32xf32>
    %cst_83 = arith.constant dense<0xFF800000> : vector<32xf32>
    %177 = vector.multi_reduction <maximumf>, %176, %cst_83 [1] : vector<32x32xf32> to vector<32xf32>
    %178 = vector.shape_cast %177 : vector<32xf32> to vector<32x1xf32>
    %179 = vector.broadcast %178 : vector<32x1xf32> to vector<32x32xf32>
    %180 = arith.subf %176, %179 : vector<32x32xf32>
    %181 = math.exp %180 : vector<32x32xf32>
    %cst_84 = arith.constant dense<0.000000e+00> : vector<32xf32>
    %182 = vector.multi_reduction <add>, %181, %cst_84 [1] : vector<32x32xf32> to vector<32xf32>
    %183 = vector.shape_cast %182 : vector<32xf32> to vector<32x1xf32>
    %184 = tpu.reciprocal %183 {approx = true} : vector<32x1xf32> -> vector<32x1xf32>
    %185 = vector.broadcast %184 : vector<32x1xf32> to vector<32x32xf32>
    %186 = arith.mulf %181, %185 : vector<32x32xf32>
    %cst_85 = arith.constant dense<0.000000e+00> : vector<32x16xf32>
    %187 = tpu.matmul %186, %172, %cst_85 {dimension_numbers = #tpu.dot_dimension_numbers<[1], [0], [0], [1], [0, 0, 1, 1], [], []>} : vector<32x32xf32>, vector<32x16xf32>, vector<32x16xf32> -> vector<32x16xf32>
    %188 = vector.extract_strided_slice %169 {offsets = [0, 16], sizes = [32, 16], strides = [1, 1]} : vector<32x96xf32> to vector<32x16xf32>
    %189 = vector.extract_strided_slice %169 {offsets = [0, 48], sizes = [32, 16], strides = [1, 1]} : vector<32x96xf32> to vector<32x16xf32>
    %190 = vector.extract_strided_slice %169 {offsets = [0, 80], sizes = [32, 16], strides = [1, 1]} : vector<32x96xf32> to vector<32x16xf32>
    %cst_86 = arith.constant 2.500000e-01 : f32
    %191 = vector.broadcast %cst_86 : f32 to vector<32x16xf32>
    %192 = arith.mulf %188, %191 : vector<32x16xf32>
    "tpu.trace_start"() <{level = 10 : i32, message = "qd,kd->qk"}> : () -> ()
    %cst_87 = arith.constant dense<0.000000e+00> : vector<32x32xf32>
    %193 = tpu.matmul %192, %189, %cst_87 {dimension_numbers = #tpu.dot_dimension_numbers<[1], [1], [0], [0], [0, 0, 1, 0], [], []>} : vector<32x16xf32>, vector<32x16xf32>, vector<32x32xf32> -> vector<32x32xf32>
    "tpu.trace_stop"() : () -> ()
    %194 = arith.addf %193, %25 : vector<32x32xf32>
    %cst_88 = arith.constant dense<0xFF800000> : vector<32xf32>
    %195 = vector.multi_reduction <maximumf>, %194, %cst_88 [1] : vector<32x32xf32> to vector<32xf32>
    %196 = vector.shape_cast %195 : vector<32xf32> to vector<32x1xf32>
    %197 = vector.broadcast %196 : vector<32x1xf32> to vector<32x32xf32>
    %198 = arith.subf %194, %197 : vector<32x32xf32>
    %199 = math.exp %198 : vector<32x32xf32>
    %cst_89 = arith.constant dense<0.000000e+00> : vector<32xf32>
    %200 = vector.multi_reduction <add>, %199, %cst_89 [1] : vector<32x32xf32> to vector<32xf32>
    %201 = vector.shape_cast %200 : vector<32xf32> to vector<32x1xf32>
    %202 = tpu.reciprocal %201 {approx = true} : vector<32x1xf32> -> vector<32x1xf32>
    %203 = vector.broadcast %202 : vector<32x1xf32> to vector<32x32xf32>
    %204 = arith.mulf %199, %203 : vector<32x32xf32>
    %cst_90 = arith.constant dense<0.000000e+00> : vector<32x16xf32>
    %205 = tpu.matmul %204, %190, %cst_90 {dimension_numbers = #tpu.dot_dimension_numbers<[1], [0], [0], [1], [0, 0, 1, 1], [], []>} : vector<32x32xf32>, vector<32x16xf32>, vector<32x16xf32> -> vector<32x16xf32>
    %206 = tpu.concatenate %187, %205 in 1 : vector<32x16xf32>, vector<32x16xf32> -> vector<32x32xf32>
    %207 = arith.truncf %206 : vector<32x32xf32> to vector<32x32xbf16>
    %c1_91 = arith.constant 1 : index
    %c0_92 = arith.constant 0 : index
    %c0_93 = arith.constant 0 : index
    %208 = vector.load %arg7[%c1_91, %c0_92, %c0_93] : memref<2x32x32xbf16, #tpu.memory_space<vmem>>, vector<1x32x32xbf16>
    %209 = vector.shape_cast %208 : vector<1x32x32xbf16> to vector<32x32xbf16>
    %cst_94 = arith.constant dense<0.000000e+00> : vector<32x32xf32>
    %210 = tpu.matmul %207, %209, %cst_94 {dimension_numbers = #tpu.dot_dimension_numbers<[1], [0], [0], [1], [0, 0, 1, 1], [], []>} : vector<32x32xbf16>, vector<32x32xbf16>, vector<32x32xf32> -> vector<32x32xf32>
    %c1_95 = arith.constant 1 : index
    %c0_96 = arith.constant 0 : index
    %c0_97 = arith.constant 0 : index
    %211 = vector.load %arg8[%c1_95, %c0_96, %c0_97] : memref<2x1x32xf32, #tpu.memory_space<vmem>>, vector<1x1x32xf32>
    %212 = vector.shape_cast %211 : vector<1x1x32xf32> to vector<1x32xf32>
    %213 = vector.broadcast %212 : vector<1x32xf32> to vector<32x32xf32>
    %214 = arith.addf %210, %213 : vector<32x32xf32>
    %215 = arith.addf %214, %161 : vector<32x32xf32>
    %c1_98 = arith.constant 1 : index
    %c0_99 = arith.constant 0 : index
    %c0_100 = arith.constant 0 : index
    %216 = vector.load %arg9[%c1_98, %c0_99, %c0_100] : memref<2x1x32xf32, #tpu.memory_space<vmem>>, vector<1x1x32xf32>
    %217 = vector.shape_cast %216 : vector<1x1x32xf32> to vector<1x32xf32>
    %c1_101 = arith.constant 1 : index
    %c0_102 = arith.constant 0 : index
    %c0_103 = arith.constant 0 : index
    %218 = vector.load %arg10[%c1_101, %c0_102, %c0_103] : memref<2x1x32xf32, #tpu.memory_space<vmem>>, vector<1x1x32xf32>
    %219 = vector.shape_cast %218 : vector<1x1x32xf32> to vector<1x32xf32>
    %cst_104 = arith.constant dense<0.000000e+00> : vector<32xf32>
    %220 = vector.multi_reduction <add>, %215, %cst_104 [1] : vector<32x32xf32> to vector<32xf32>
    %221 = vector.shape_cast %220 : vector<32xf32> to vector<32x1xf32>
    %cst_105 = arith.constant 3.200000e+01 : f32
    %222 = vector.broadcast %cst_105 : f32 to vector<32x1xf32>
    %223 = arith.divf %221, %222 : vector<32x1xf32>
    %224 = vector.broadcast %223 : vector<32x1xf32> to vector<32x32xf32>
    %225 = arith.subf %215, %224 : vector<32x32xf32>
    %226 = arith.mulf %225, %225 : vector<32x32xf32>
    %cst_106 = arith.constant dense<0.000000e+00> : vector<32xf32>
    %227 = vector.multi_reduction <add>, %226, %cst_106 [1] : vector<32x32xf32> to vector<32xf32>
    %228 = vector.shape_cast %227 : vector<32xf32> to vector<32x1xf32>
    %cst_107 = arith.constant 3.200000e+01 : f32
    %229 = vector.broadcast %cst_107 : f32 to vector<32x1xf32>
    %230 = arith.divf %228, %229 : vector<32x1xf32>
    %231 = vector.broadcast %223 : vector<32x1xf32> to vector<32x32xf32>
    %232 = arith.subf %215, %231 : vector<32x32xf32>
    %cst_108 = arith.constant 9.99999996E-13 : f32
    %233 = vector.broadcast %cst_108 : f32 to vector<32x1xf32>
    %234 = arith.addf %230, %233 : vector<32x1xf32>
    %235 = math.rsqrt %234 : vector<32x1xf32>
    %236 = vector.broadcast %235 : vector<32x1xf32> to vector<32x32xf32>
    %237 = arith.mulf %232, %236 : vector<32x32xf32>
    %238 = vector.broadcast %217 : vector<1x32xf32> to vector<32x32xf32>
    %239 = arith.mulf %237, %238 : vector<32x32xf32>
    %240 = vector.broadcast %219 : vector<1x32xf32> to vector<32x32xf32>
    %241 = arith.addf %239, %240 : vector<32x32xf32>
    %242 = arith.truncf %241 : vector<32x32xf32> to vector<32x32xbf16>
    %c1_109 = arith.constant 1 : index
    %c0_110 = arith.constant 0 : index
    %c0_111 = arith.constant 0 : index
    %243 = vector.load %arg11[%c1_109, %c0_110, %c0_111] : memref<2x32x64xbf16, #tpu.memory_space<vmem>>, vector<1x32x64xbf16>
    %244 = vector.shape_cast %243 : vector<1x32x64xbf16> to vector<32x64xbf16>
    %cst_112 = arith.constant dense<0.000000e+00> : vector<32x64xf32>
    %245 = tpu.matmul %242, %244, %cst_112 {dimension_numbers = #tpu.dot_dimension_numbers<[1], [0], [0], [1], [0, 0, 1, 1], [], []>} : vector<32x32xbf16>, vector<32x64xbf16>, vector<32x64xf32> -> vector<32x64xf32>
    %c1_113 = arith.constant 1 : index
    %c0_114 = arith.constant 0 : index
    %c0_115 = arith.constant 0 : index
    %246 = vector.load %arg12[%c1_113, %c0_114, %c0_115] : memref<2x1x64xf32, #tpu.memory_space<vmem>>, vector<1x1x64xf32>
    %247 = vector.shape_cast %246 : vector<1x1x64xf32> to vector<1x64xf32>
    %248 = vector.broadcast %247 : vector<1x64xf32> to vector<32x64xf32>
    %249 = arith.addf %245, %248 : vector<32x64xf32>
    %250 = arith.mulf %249, %249 : vector<32x64xf32>
    %251 = arith.mulf %249, %250 : vector<32x64xf32>
    %cst_116 = arith.constant 4.471500e-02 : f32
    %252 = vector.broadcast %cst_116 : f32 to vector<32x64xf32>
    %253 = arith.mulf %252, %251 : vector<32x64xf32>
    %254 = arith.addf %249, %253 : vector<32x64xf32>
    %cst_117 = arith.constant 0.797884583 : f32
    %255 = vector.broadcast %cst_117 : f32 to vector<32x64xf32>
    %256 = arith.mulf %255, %254 : vector<32x64xf32>
    %257 = math.tanh %256 : vector<32x64xf32>
    %cst_118 = arith.constant 1.000000e+00 : f32
    %258 = vector.broadcast %cst_118 : f32 to vector<32x64xf32>
    %259 = arith.addf %258, %257 : vector<32x64xf32>
    %cst_119 = arith.constant 5.000000e-01 : f32
    %260 = vector.broadcast %cst_119 : f32 to vector<32x64xf32>
    %261 = arith.mulf %260, %259 : vector<32x64xf32>
    %262 = arith.mulf %249, %261 : vector<32x64xf32>
    %263 = arith.truncf %262 : vector<32x64xf32> to vector<32x64xbf16>
    %c1_120 = arith.constant 1 : index
    %c0_121 = arith.constant 0 : index
    %c0_122 = arith.constant 0 : index
    %264 = vector.load %arg13[%c1_120, %c0_121, %c0_122] : memref<2x64x32xbf16, #tpu.memory_space<vmem>>, vector<1x64x32xbf16>
    %265 = vector.shape_cast %264 : vector<1x64x32xbf16> to vector<64x32xbf16>
    %cst_123 = arith.constant dense<0.000000e+00> : vector<32x32xf32>
    %266 = tpu.matmul %263, %265, %cst_123 {dimension_numbers = #tpu.dot_dimension_numbers<[1], [0], [0], [1], [0, 0, 1, 1], [], []>} : vector<32x64xbf16>, vector<64x32xbf16>, vector<32x32xf32> -> vector<32x32xf32>
    %c1_124 = arith.constant 1 : index
    %c0_125 = arith.constant 0 : index
    %c0_126 = arith.constant 0 : index
    %267 = vector.load %arg14[%c1_124, %c0_125, %c0_126] : memref<2x1x32xf32, #tpu.memory_space<vmem>>, vector<1x1x32xf32>
    %268 = vector.shape_cast %267 : vector<1x1x32xf32> to vector<1x32xf32>
    %269 = vector.broadcast %268 : vector<1x32xf32> to vector<32x32xf32>
    %270 = arith.addf %266, %269 : vector<32x32xf32>
    %271 = arith.addf %270, %241 : vector<32x32xf32>
    %c1_127 = arith.constant 1 : index
    %c0_128 = arith.constant 0 : index
    %c0_129 = arith.constant 0 : index
    %272 = vector.load %arg15[%c1_127, %c0_128, %c0_129] : memref<2x1x32xf32, #tpu.memory_space<vmem>>, vector<1x1x32xf32>
    %273 = vector.shape_cast %272 : vector<1x1x32xf32> to vector<1x32xf32>
    %c1_130 = arith.constant 1 : index
    %c0_131 = arith.constant 0 : index
    %c0_132 = arith.constant 0 : index
    %274 = vector.load %arg16[%c1_130, %c0_131, %c0_132] : memref<2x1x32xf32, #tpu.memory_space<vmem>>, vector<1x1x32xf32>
    %275 = vector.shape_cast %274 : vector<1x1x32xf32> to vector<1x32xf32>
    %cst_133 = arith.constant dense<0.000000e+00> : vector<32xf32>
    %276 = vector.multi_reduction <add>, %271, %cst_133 [1] : vector<32x32xf32> to vector<32xf32>
    %277 = vector.shape_cast %276 : vector<32xf32> to vector<32x1xf32>
    %cst_134 = arith.constant 3.200000e+01 : f32
    %278 = vector.broadcast %cst_134 : f32 to vector<32x1xf32>
    %279 = arith.divf %277, %278 : vector<32x1xf32>
    %280 = vector.broadcast %279 : vector<32x1xf32> to vector<32x32xf32>
    %281 = arith.subf %271, %280 : vector<32x32xf32>
    %282 = arith.mulf %281, %281 : vector<32x32xf32>
    %cst_135 = arith.constant dense<0.000000e+00> : vector<32xf32>
    %283 = vector.multi_reduction <add>, %282, %cst_135 [1] : vector<32x32xf32> to vector<32xf32>
    %284 = vector.shape_cast %283 : vector<32xf32> to vector<32x1xf32>
    %cst_136 = arith.constant 3.200000e+01 : f32
    %285 = vector.broadcast %cst_136 : f32 to vector<32x1xf32>
    %286 = arith.divf %284, %285 : vector<32x1xf32>
    %287 = vector.broadcast %279 : vector<32x1xf32> to vector<32x32xf32>
    %288 = arith.subf %271, %287 : vector<32x32xf32>
    %cst_137 = arith.constant 9.99999996E-13 : f32
    %289 = vector.broadcast %cst_137 : f32 to vector<32x1xf32>
    %290 = arith.addf %286, %289 : vector<32x1xf32>
    %291 = math.rsqrt %290 : vector<32x1xf32>
    %292 = vector.broadcast %291 : vector<32x1xf32> to vector<32x32xf32>
    %293 = arith.mulf %288, %292 : vector<32x32xf32>
    %294 = vector.broadcast %273 : vector<1x32xf32> to vector<32x32xf32>
    %295 = arith.mulf %293, %294 : vector<32x32xf32>
    %296 = vector.broadcast %275 : vector<1x32xf32> to vector<32x32xf32>
    %297 = arith.addf %295, %296 : vector<32x32xf32>
    %c0_138 = arith.constant 0 : index
    %c0_139 = arith.constant 0 : index
    %298 = vector.load %arg2[%c0_138, %c0_139] : memref<4x32xf32, #tpu.memory_space<vmem>>, vector<4x32xf32>
    %cst_140 = arith.constant dense<0.000000e+00> : vector<4x32xf32>
    %299 = tpu.matmul %298, %297, %cst_140 {dimension_numbers = #tpu.dot_dimension_numbers<[1], [0], [0], [1], [0, 0, 1, 1], [], []>} : vector<4x32xf32>, vector<32x32xf32>, vector<4x32xf32> -> vector<4x32xf32>
    %300 = arith.truncf %299 : vector<4x32xf32> to vector<4x32xbf16>
    %c0_141 = arith.constant 0 : index
    %c0_142 = arith.constant 0 : index
    %301 = vector.load %arg17[%c0_141, %c0_142] : memref<32x32xbf16, #tpu.memory_space<vmem>>, vector<32x32xbf16>
    %cst_143 = arith.constant dense<0.000000e+00> : vector<4x32xf32>
    %302 = tpu.matmul %300, %301, %cst_143 {dimension_numbers = #tpu.dot_dimension_numbers<[1], [0], [0], [1], [0, 0, 1, 1], [], []>} : vector<4x32xbf16>, vector<32x32xbf16>, vector<4x32xf32> -> vector<4x32xf32>
    %c0_144 = arith.constant 0 : index
    %c0_145 = arith.constant 0 : index
    %303 = vector.load %arg18[%c0_144, %c0_145] : memref<1x32xf32, #tpu.memory_space<vmem>>, vector<1x32xf32>
    %304 = vector.broadcast %303 : vector<1x32xf32> to vector<4x32xf32>
    %305 = arith.addf %302, %304 : vector<4x32xf32>
    %306 = math.tanh %305 : vector<4x32xf32>
    %307 = vector.extract_strided_slice %306 {offsets = [0, 0], sizes = [2, 32], strides = [1, 1]} : vector<4x32xf32> to vector<2x32xf32>
    %308 = vector.extract_strided_slice %306 {offsets = [2, 0], sizes = [2, 32], strides = [1, 1]} : vector<4x32xf32> to vector<2x32xf32>
    %c0_146 = arith.constant 0 : index
    %c0_147 = arith.constant 0 : index
    %309 = vector.load %arg19[%c0_146, %c0_147] : memref<32x1xf32, #tpu.memory_space<vmem>>, vector<32x1xf32>
    %cst_148 = arith.constant dense<0.000000e+00> : vector<2x1xf32>
    %310 = tpu.matmul %307, %309, %cst_148 {dimension_numbers = #tpu.dot_dimension_numbers<[1], [0], [0], [1], [0, 0, 1, 1], [], []>} : vector<2x32xf32>, vector<32x1xf32>, vector<2x1xf32> -> vector<2x1xf32>
    %c0_149 = arith.constant 0 : index
    %c0_150 = arith.constant 0 : index
    %311 = vector.load %arg20[%c0_149, %c0_150] : memref<32x1xf32, #tpu.memory_space<vmem>>, vector<32x1xf32>
    %cst_151 = arith.constant dense<0.000000e+00> : vector<2x1xf32>
    %312 = tpu.matmul %308, %311, %cst_151 {dimension_numbers = #tpu.dot_dimension_numbers<[1], [0], [0], [1], [0, 0, 1, 1], [], []>} : vector<2x32xf32>, vector<32x1xf32>, vector<2x1xf32> -> vector<2x1xf32>
    %313 = arith.addf %310, %312 : vector<2x1xf32>
    %c0_152 = arith.constant 0 : index
    %c0_153 = arith.constant 0 : index
    %314 = vector.load %arg21[%c0_152, %c0_153] : memref<1x1xf32, #tpu.memory_space<vmem>>, vector<1x1xf32>
    %315 = vector.broadcast %314 : vector<1x1xf32> to vector<2x1xf32>
    %316 = arith.addf %313, %315 : vector<2x1xf32>
    %c0_154 = arith.constant 0 : index
    %c0_155 = arith.constant 0 : index
    %317 = vector.load %arg22[%c0_154, %c0_155] : memref<2x1xf32, #tpu.memory_space<vmem>>, vector<2x1xf32>
    tpu.vector_store %arg22[%c0_154, %c0_155], %316 {strides = array<i32>} : memref<2x1xf32, #tpu.memory_space<vmem>>, vector<2x1xf32>,
    return
  }
}

</mosaic_0001>

<llo_original>
// kernel: pairwise_bert_forward.1
$region0: #{pairwise_bert_forward.1}
  #allocation0 [shape = 'u32[]', space=smem, size = 0x4, offset = 0x4, fixed_abs, tag = 'smem constant byte address 0x4 - core index']
  #allocation1 [shape = 'u32[72,128]{1,0:T(1,128)}', space=vmem, size = 0x9000, scoped, tag = 'internal scratch']
  #allocation2 [shape = 'f32[1,1]{1,0:T(1,128)S(1)}', space=vmem, size = 0x200, scoped, tag = 'scoped memory for pairwise_bert_forward.1']
  %s0 = inlined_call_operand.vmem [shape: f32[32,32], index: 0, kind: input, shape index: {}]
  %s1 = inlined_call_operand.vmem [shape: f32[32,32], index: 1, kind: input, shape index: {}]
  %s2 = inlined_call_operand.vmem [shape: f32[4,32], index: 2, kind: input, shape index: {}]
  %s3 = inlined_call_operand.vmem [shape: f32[1,32], index: 3, kind: input, shape index: {}]
  %s4 = inlined_call_operand.vmem [shape: f32[1,32], index: 4, kind: input, shape index: {}]
  %s5 = inlined_call_operand.vmem [shape: bf16[2,32,96], index: 5, kind: input, shape index: {}]
  %s6 = inlined_call_operand.vmem [shape: f32[2,1,96], index: 6, kind: input, shape index: {}]
  %s7 = inlined_call_operand.vmem [shape: bf16[2,32,32], index: 7, kind: input, shape index: {}]
  %s8 = inlined_call_operand.vmem [shape: f32[2,1,32], index: 8, kind: input, shape index: {}]
  %s9 = inlined_call_operand.vmem [shape: f32[2,1,32], index: 9, kind: input, shape index: {}]
  %s10 = inlined_call_operand.vmem [shape: f32[2,1,32], index: 10, kind: input, shape index: {}]
  %s11 = inlined_call_operand.vmem [shape: bf16[2,32,64], index: 11, kind: input, shape index: {}]
  %s12 = inlined_call_operand.vmem [shape: f32[2,1,64], index: 12, kind: input, shape index: {}]
  %s13 = inlined_call_operand.vmem [shape: bf16[2,64,32], index: 13, kind: input, shape index: {}]
  %s14 = inlined_call_operand.vmem [shape: f32[2,1,32], index: 14, kind: input, shape index: {}]
  %s15 = inlined_call_operand.vmem [shape: f32[2,1,32], index: 15, kind: input, shape index: {}]
  %s16 = inlined_call_operand.vmem [shape: f32[2,1,32], index: 16, kind: input, shape index: {}]
  %s17 = inlined_call_operand.vmem [shape: bf16[32,32], index: 17, kind: input, shape index: {}]
  %s18 = inlined_call_operand.vmem [shape: f32[1,32], index: 18, kind: input, shape index: {}]
  %s19 = inlined_call_operand.vmem [shape: f32[32,1], index: 19, kind: input, shape index: {}]
  %s20 = inlined_call_operand.vmem [shape: f32[32,1], index: 20, kind: input, shape index: {}]
  %s21 = inlined_call_operand.<no memory space> [shape: f32[1,1], index: 21, kind: input, shape index: {}]
  %s22 = inlined_call_operand.vmem [shape: f32[2,1], index: 22, kind: output, shape index: {}]
  %s23 = sld [smem:[#allocation0]]
  $region98: #{pairwise_bert_forward.1} parent=0
    _
  %s25 = ssub.s32 1, %s23
  %s26 = scalar_select 0, %s25, %s23
  %v27 = vstv %s21
  %28 = vst [vmem:[#allocation2] sm:$0x1] %v27
  // Predicated region
  $region2: #{pairwise_bert_forward.1} parent=0 // pred_check
    _
  $region3: #{pairwise_bert_forward.1} parent=0 // pred_check_branch
    %30 = sbr.rel (0) target = $region5
  $region4: #{pairwise_bert_forward.1} parent=0 // pred_region
    _
  $region5: #{pairwise_bert_forward.1} parent=0 // pred_fallthru
    _
  // Predicated region
  $region6: #{pairwise_bert_forward.1} parent=0 // pred_check
    _
  $region7: #{pairwise_bert_forward.1} parent=0 // pred_check_branch
    %32 = sbr.rel (0) target = $region9
  $region8: #{pairwise_bert_forward.1} parent=0 // pred_region
    _
  $region9: #{pairwise_bert_forward.1} parent=0 // pred_fallthru
    _
  // Predicated region
  $region10: #{pairwise_bert_forward.1} parent=0 // pred_check
    _
  $region11: #{pairwise_bert_forward.1} parent=0 // pred_check_branch
    %34 = sbr.rel (0) target = $region13
  $region12: #{pairwise_bert_forward.1} parent=0 // pred_region
    _
  $region13: #{pairwise_bert_forward.1} parent=0 // pred_fallthru
    _
  // Predicated region
  $region14: #{pairwise_bert_forward.1} parent=0 // pred_check
    _
  $region15: #{pairwise_bert_forward.1} parent=0 // pred_check_branch
    %36 = sbr.rel (0) target = $region17
  $region16: #{pairwise_bert_forward.1} parent=0 // pred_region
    _
  $region17: #{pairwise_bert_forward.1} parent=0 // pred_fallthru
    _
  // Predicated region
  $region18: #{pairwise_bert_forward.1} parent=0 // pred_check
    _
  $region19: #{pairwise_bert_forward.1} parent=0 // pred_check_branch
    %38 = sbr.rel (0) target = $region21
  $region20: #{pairwise_bert_forward.1} parent=0 // pred_region
    _
  $region21: #{pairwise_bert_forward.1} parent=0 // pred_fallthru
    _
  // Predicated region
  $region22: #{pairwise_bert_forward.1} parent=0 // pred_check
    _
  $region23: #{pairwise_bert_forward.1} parent=0 // pred_check_branch
    %40 = sbr.rel (0) target = $region25
  $region24: #{pairwise_bert_forward.1} parent=0 // pred_region
    _
  $region25: #{pairwise_bert_forward.1} parent=0 // pred_fallthru
    _
  // Predicated region
  $region26: #{pairwise_bert_forward.1} parent=0 // pred_check
    _
  $region27: #{pairwise_bert_forward.1} parent=0 // pred_check_branch
    %42 = sbr.rel (0) target = $region29
  $region28: #{pairwise_bert_forward.1} parent=0 // pred_region
    _
  $region29: #{pairwise_bert_forward.1} parent=0 // pred_fallthru
    _
  // Predicated region
  $region30: #{pairwise_bert_forward.1} parent=0 // pred_check
    _
  $region31: #{pairwise_bert_forward.1} parent=0 // pred_check_branch
    %44 = sbr.rel (0) target = $region33
  $region32: #{pairwise_bert_forward.1} parent=0 // pred_region
    _
  $region33: #{pairwise_bert_forward.1} parent=0 // pred_fallthru
    _
  // Predicated region
  $region34: #{pairwise_bert_forward.1} parent=0 // pred_check
    _
  $region35: #{pairwise_bert_forward.1} parent=0 // pred_check_branch
    %46 = sbr.rel (0) target = $region37
  $region36: #{pairwise_bert_forward.1} parent=0 // pred_region
    _
  $region37: #{pairwise_bert_forward.1} parent=0 // pred_fallthru
    _
  // Predicated region
  $region38: #{pairwise_bert_forward.1} parent=0 // pred_check
    _
  $region39: #{pairwise_bert_forward.1} parent=0 // pred_check_branch
    %48 = sbr.rel (0) target = $region41
  $region40: #{pairwise_bert_forward.1} parent=0 // pred_region
    _
  $region41: #{pairwise_bert_forward.1} parent=0 // pred_fallthru
    _
  // Predicated region
  $region42: #{pairwise_bert_forward.1} parent=0 // pred_check
    _
  $region43: #{pairwise_bert_forward.1} parent=0 // pred_check_branch
    %50 = sbr.rel (0) target = $region45
  $region44: #{pairwise_bert_forward.1} parent=0 // pred_region
    _
  $region45: #{pairwise_bert_forward.1} parent=0 // pred_fallthru
    _
  // Predicated region
  $region46: #{pairwise_bert_forward.1} parent=0 // pred_check
    _
  $region47: #{pairwise_bert_forward.1} parent=0 // pred_check_branch
    %52 = sbr.rel (0) target = $region49
  $region48: #{pairwise_bert_forward.1} parent=0 // pred_region
    _
  $region49: #{pairwise_bert_forward.1} parent=0 // pred_fallthru
    _
  // Predicated region
  $region50: #{pairwise_bert_forward.1} parent=0 // pred_check
    _
  $region51: #{pairwise_bert_forward.1} parent=0 // pred_check_branch
    %54 = sbr.rel (0) target = $region53
  $region52: #{pairwise_bert_forward.1} parent=0 // pred_region
    _
  $region53: #{pairwise_bert_forward.1} parent=0 // pred_fallthru
    _
  // Predicated region
  $region54: #{pairwise_bert_forward.1} parent=0 // pred_check
    _
  $region55: #{pairwise_bert_forward.1} parent=0 // pred_check_branch
    %56 = sbr.rel (0) target = $region57
  $region56: #{pairwise_bert_forward.1} parent=0 // pred_region
    _
  $region57: #{pairwise_bert_forward.1} parent=0 // pred_fallthru
    _
  // Predicated region
  $region58: #{pairwise_bert_forward.1} parent=0 // pred_check
    _
  $region59: #{pairwise_bert_forward.1} parent=0 // pred_check_branch
    %58 = sbr.rel (0) target = $region61
  $region60: #{pairwise_bert_forward.1} parent=0 // pred_region
    _
  $region61: #{pairwise_bert_forward.1} parent=0 // pred_fallthru
    _
  // Predicated region
  $region62: #{pairwise_bert_forward.1} parent=0 // pred_check
    _
  $region63: #{pairwise_bert_forward.1} parent=0 // pred_check_branch
    %60 = sbr.rel (0) target = $region65
  $region64: #{pairwise_bert_forward.1} parent=0 // pred_region
    _
  $region65: #{pairwise_bert_forward.1} parent=0 // pred_fallthru
    _
  // Predicated region
  $region66: #{pairwise_bert_forward.1} parent=0 // pred_check
    _
  $region67: #{pairwise_bert_forward.1} parent=0 // pred_check_branch
    %62 = sbr.rel (0) target = $region69
  $region68: #{pairwise_bert_forward.1} parent=0 // pred_region
    _
  $region69: #{pairwise_bert_forward.1} parent=0 // pred_fallthru
    _
  // Predicated region
  $region70: #{pairwise_bert_forward.1} parent=0 // pred_check
    _
  $region71: #{pairwise_bert_forward.1} parent=0 // pred_check_branch
    %64 = sbr.rel (0) target = $region73
  $region72: #{pairwise_bert_forward.1} parent=0 // pred_region
    _
  $region73: #{pairwise_bert_forward.1} parent=0 // pred_fallthru
    _
  // Predicated region
  $region74: #{pairwise_bert_forward.1} parent=0 // pred_check
    _
  $region75: #{pairwise_bert_forward.1} parent=0 // pred_check_branch
    %66 = sbr.rel (0) target = $region77
  $region76: #{pairwise_bert_forward.1} parent=0 // pred_region
    _
  $region77: #{pairwise_bert_forward.1} parent=0 // pred_fallthru
    _
  // Predicated region
  $region78: #{pairwise_bert_forward.1} parent=0 // pred_check
    _
  $region79: #{pairwise_bert_forward.1} parent=0 // pred_check_branch
    %68 = sbr.rel (0) target = $region81
  $region80: #{pairwise_bert_forward.1} parent=0 // pred_region
    _
  $region81: #{pairwise_bert_forward.1} parent=0 // pred_fallthru
    _
  // Predicated region
  $region82: #{pairwise_bert_forward.1} parent=0 // pred_check
    _
  $region83: #{pairwise_bert_forward.1} parent=0 // pred_check_branch
    %70 = sbr.rel (0) target = $region85
  $region84: #{pairwise_bert_forward.1} parent=0 // pred_region
    _
  $region85: #{pairwise_bert_forward.1} parent=0 // pred_fallthru
    _
  // Predicated region
  $region86: #{pairwise_bert_forward.1} parent=0 // pred_check
    _
  $region87: #{pairwise_bert_forward.1} parent=0 // pred_check_branch
    %72 = sbr.rel (0) target = $region89
  $region88: #{pairwise_bert_forward.1} parent=0 // pred_region
    _
  $region89: #{pairwise_bert_forward.1} parent=0 // pred_fallthru
    _
  %v74 = vld [vmem:[%s0] sm:$0xff]
  %v75 = vld [vmem:[%s0 + $0x8] sm:$0xff]
  %v76 = vld [vmem:[%s0 + $0x10] sm:$0xff]
  %v77 = vld [vmem:[%s0 + $0x18] sm:$0xff]
  %v78 = vld [vmem:[%s3] sm:$0x1]
  %v79 = vld [vmem:[%s4] sm:$0x1]
  %vm80 = vcmask 261120
  %v81 = vsel %vm80, %v74, 0.0
  %82 = vadd.xlane.f32.xlu0 %v81
  %v83 = vpop.xlane.xlu0 %82
  %v84 = vsel %vm80, %v75, 0.0
  %85 = vadd.xlane.f32.xlu0 %v84
  %v86 = vpop.xlane.xlu0 %85
  %v87 = vsel %vm80, %v76, 0.0
  %88 = vadd.xlane.f32.xlu0 %v87
  %v89 = vpop.xlane.xlu0 %88
  %v90 = vsel %vm80, %v77, 0.0
  %91 = vadd.xlane.f32.xlu0 %v90
  %v92 = vpop.xlane.xlu0 %91
  %v93 = vrcp.pop 32.0
  %v94 = vmul.f32 32.0, %v93
  %v95 = vsub.f32 1.0, %v94
  %v96 = vmul.f32 %v93, %v95
  %v97 = vadd.f32 %v93, %v96
  %vm98 = vweird.f32 %v93
  %v99 = vsel %vm98, %v93, %v97
  %v100 = vmul.f32 %v83, %v99
  %v101 = vmul.f32 %v86, %v99
  %v102 = vmul.f32 %v89, %v99
  %v103 = vmul.f32 %v92, %v99
  %v104 = vsub.f32 %v74, %v100
  %v105 = vsub.f32 %v75, %v101
  %v106 = vsub.f32 %v76, %v102
  %v107 = vsub.f32 %v77, %v103
  %v108 = vmul.f32 %v104, %v104
  %v109 = vmul.f32 %v105, %v105
  %v110 = vmul.f32 %v106, %v106
  %v111 = vmul.f32 %v107, %v107
  %v112 = vsel %vm80, %v108, 0.0
  %113 = vadd.xlane.f32.xlu0 %v112
  %v114 = vpop.xlane.xlu0 %113
  %v115 = vsel %vm80, %v109, 0.0
  %116 = vadd.xlane.f32.xlu0 %v115
  %v117 = vpop.xlane.xlu0 %116
  %v118 = vsel %vm80, %v110, 0.0
  %119 = vadd.xlane.f32.xlu0 %v118
  %v120 = vpop.xlane.xlu0 %119
  %v121 = vsel %vm80, %v111, 0.0
  %122 = vadd.xlane.f32.xlu0 %v121
  %v123 = vpop.xlane.xlu0 %122
  %v124 = vmul.f32 %v114, %v99
  %v125 = vmul.f32 %v117, %v99
  %v126 = vmul.f32 %v120, %v99
  %v127 = vmul.f32 %v123, %v99
  %v128 = vadd.f32 %v124, 1e-12
  %v129 = vadd.f32 %v125, 1e-12
  %v130 = vadd.f32 %v126, 1e-12
  %v131 = vadd.f32 %v127, 1e-12
  %v132 = vrsqrt.pop %v128
  %v133 = vmul.f32 %v132, %v128
  %v134 = vmul.f32 %v133, %v132
  %v135 = vmul.f32 0.5, %v134
  %v136 = vsub.f32 1.5, %v135
  %v137 = vmul.f32 %v132, %v136
  %vm138 = vweird.f32 %v128
  %vm139 = vweird.f32 %v132
  %vm140 = vmor %vm138, %vm139
  %v141 = vsel %vm140, %v132, %v137
  %v142 = vrsqrt.pop %v129
  %v143 = vmul.f32 %v142, %v129
  %v144 = vmul.f32 %v143, %v142
  %v145 = vmul.f32 0.5, %v144
  %v146 = vsub.f32 1.5, %v145
  %v147 = vmul.f32 %v142, %v146
  %vm148 = vweird.f32 %v129
  %vm149 = vweird.f32 %v142
  %vm150 = vmor %vm148, %vm149
  %v151 = vsel %vm150, %v142, %v147
  %v152 = vrsqrt.pop %v130
  %v153 = vmul.f32 %v152, %v130
  %v154 = vmul.f32 %v153, %v152
  %v155 = vmul.f32 0.5, %v154
  %v156 = vsub.f32 1.5, %v155
  %v157 = vmul.f32 %v152, %v156
  %vm158 = vweird.f32 %v130
  %vm159 = vweird.f32 %v152
  %vm160 = vmor %vm158, %vm159
  %v161 = vsel %vm160, %v152, %v157
  %v162 = vrsqrt.pop %v131
  %v163 = vmul.f32 %v162, %v131
  %v164 = vmul.f32 %v163, %v162
  %v165 = vmul.f32 0.5, %v164
  %v166 = vsub.f32 1.5, %v165
  %v167 = vmul.f32 %v162, %v166
  %vm168 = vweird.f32 %v131
  %vm169 = vweird.f32 %v162
  %vm170 = vmor %vm168, %vm169
  %v171 = vsel %vm170, %v162, %v167
  %v172 = vmul.f32 %v104, %v141
  %v173 = vmul.f32 %v105, %v151
  %v174 = vmul.f32 %v106, %v161
  %v175 = vmul.f32 %v107, %v171
  %v177 = vperm.slane %v78, 0
  %v179 = vmul.f32 %v172, %v177
  %v180 = vmul.f32 %v173, %v177
  %v181 = vmul.f32 %v174, %v177
  %v182 = vmul.f32 %v175, %v177
  %v184 = vperm.slane %v79, 0
  %v186 = vadd.f32 %v179, %v184
  %v187 = vadd.f32 %v180, %v184
  %v188 = vadd.f32 %v181, %v184
  %v189 = vadd.f32 %v182, %v184
  %v190 = vld [vmem:[%s1] sm:$0xff]
  %v191 = vld [vmem:[%s1 + $0x8] sm:$0xff]
  %v192 = vld [vmem:[%s1 + $0x10] sm:$0xff]
  %v193 = vld [vmem:[%s1 + $0x18] sm:$0xff]
  %v194 = vpack.c.bf16 %v187, %v186
  %v195 = vpack.c.bf16 %v189, %v188
  %v196 = vld [vmem:[%s5] sm:$0xf]
  %v197 = vld [vmem:[%s5 + $0x4] sm:$0xf]
  %v198 = vld [vmem:[%s5 + $0x8] sm:$0xf]
  %v199 = vld [vmem:[%s5 + $0xc] sm:$0xf]
  %v200 = vld [vmem:[%s6] sm:$0x1]
  %v202 = vperm.slane %v200, 0
  %v208 = vunpack.c.l.b16 %v196
  %v209 = vunpack.c.l.b16 %v197
  %v210 = vunpack.c.l.b16 %v198
  %v211 = vunpack.c.l.b16 %v199
  %v212 = vpack.c.b16 %v209, %v208
  %v213 = vpack.c.b16 %v211, %v210
  %v217 = vsel %vm80, %v194, 0
  %v220 = vsel %vm80, %v195, 0
  %222 = vmatpush.bf16.msra.mxu0 0
  %223 = vmatpush.bf16.msra.mxu0 0
  %224 = vmatpush.bf16.msra.mxu0 0
  %225 = vmatpush.bf16.msra.mxu0 0
  %226 = vmatpush.bf16.msra.mxu0 0
  %227 = vmatpush.bf16.msra.mxu0 0
  %228 = vmatpush.bf16.msra.mxu0 %v213
  %229 = vmatpush.bf16.msra.mxu0 %v212
  %230 = vmatmul.bf16.gmra.mxu0 %v217
  %v231 = vpop.f32.mrf.mxu0
  %v232 = vadd.f32 %v202, %v231
  %v233 = vpop.f32.mrf.mxu0
  %v234 = vadd.f32 %v202, %v233
  %235 = vmatmul.bf16.gmra.mxu0 %v220
  %v236 = vpop.f32.mrf.mxu0
  %v237 = vadd.f32 %v202, %v236
  %v238 = vpop.f32.mrf.mxu0
  %v239 = vadd.f32 %v202, %v238
  %240 = vdwg.mxu0
  %v241 = vmul.f32 %v232, 0.25
  %v242 = vmul.f32 %v234, 0.25
  %v243 = vmul.f32 %v237, 0.25
  %v244 = vmul.f32 %v239, 0.25
  %249 = vrot.lane.b32.xlu0 %v232, 96
  %v250 = vpop.permute.xlu0 %249
  %251 = vrot.lane.b32.xlu0 %v234, 96
  %v252 = vpop.permute.xlu0 %251
  %253 = vrot.lane.b32.xlu0 %v237, 96
  %v254 = vpop.permute.xlu0 %253
  %255 = vrot.lane.b32.xlu0 %v239, 96
  %v256 = vpop.permute.xlu0 %255
  %vm257 = vcmask 130048
  %v259 = vsel %vm257, %v241, 0
  %v262 = vsel %vm257, %v242, 0
  %v265 = vsel %vm257, %v243, 0
  %v268 = vsel %vm257, %v244, 0
  %v270 = vsel %vm257, %v250, 0
  %v272 = vsel %vm257, %v252, 0
  %v274 = vsel %vm257, %v254, 0
  %v276 = vsel %vm257, %v256, 0
  %278 = vmatpush.xpose.msra.mxu0 0.0
  %279 = vmatpush.xpose.msra.mxu0 0.0
  %280 = vmatpush.xpose.msra.mxu0 0.0
  %281 = vmatpush.xpose.msra.mxu0 0.0
  %282 = vmatpush.xpose.msra.mxu0 0.0
  %283 = vmatpush.xpose.msra.mxu0 0.0
  %284 = vmatpush.xpose.msra.mxu0 0.0
  %285 = vmatpush.xpose.msra.mxu0 0.0
  %286 = vmatpush.xpose.msra.mxu0 0.0
  %287 = vmatpush.xpose.msra.mxu0 0.0
  %288 = vmatpush.xpose.msra.mxu0 0.0
  %289 = vmatpush.xpose.msra.mxu0 0.0
  %290 = vmatpush.xpose.msra.mxu0 %v276
  %291 = vmatpush.xpose.msra.mxu0 %v274
  %292 = vmatpush.xpose.msra.mxu0 %v272
  %293 = vmatpush.xpose.msra.mxu0 %v270
  %294 = vmatmul.f32.gmra.mxu0 %v259
  %v295 = vpop.f32.mrf.mxu0
  %v296 = vadd.f32 %v190, %v295
  %297 = vmatmul.f32.gmra.mxu0 %v262
  %v298 = vpop.f32.mrf.mxu0
  %v299 = vadd.f32 %v191, %v298
  %300 = vmatmul.f32.gmra.mxu0 %v265
  %v301 = vpop.f32.mrf.mxu0
  %v302 = vadd.f32 %v192, %v301
  %303 = vmatmul.f32.gmra.mxu0 %v268
  %v304 = vpop.f32.mrf.mxu0
  %v305 = vadd.f32 %v193, %v304
  %306 = vdwg.mxu0
  %v307 = vsel %vm80, %v296, -inf
  %308 = vmax.xlane.f32.xlu0 %v307
  %v309 = vpop.xlane.xlu0 %308
  %v310 = vsel %vm80, %v299, -inf
  %311 = vmax.xlane.f32.xlu0 %v310
  %v312 = vpop.xlane.xlu0 %311
  %v313 = vsel %vm80, %v302, -inf
  %314 = vmax.xlane.f32.xlu0 %v313
  %v315 = vpop.xlane.xlu0 %314
  %v316 = vsel %vm80, %v305, -inf
  %317 = vmax.xlane.f32.xlu0 %v316
  %v318 = vpop.xlane.xlu0 %317
  %v319 = vsub.f32 %v296, %v309
  %v320 = vsub.f32 %v299, %v312
  %v321 = vsub.f32 %v302, %v315
  %v322 = vsub.f32 %v305, %v318
  %v323 = vmul.f32 %v319, 1.442695
  %v324 = vpow.pop %v323
  %v325 = vmul.f32 %v320, 1.442695
  %v326 = vpow.pop %v325
  %v327 = vmul.f32 %v321, 1.442695
  %v328 = vpow.pop %v327
  %v329 = vmul.f32 %v322, 1.442695
  %v330 = vpow.pop %v329
  %v331 = vsel %vm80, %v324, 0.0
  %332 = vadd.xlane.f32.xlu0 %v331
  %v333 = vpop.xlane.xlu0 %332
  %v334 = vsel %vm80, %v326, 0.0
  %335 = vadd.xlane.f32.xlu0 %v334
  %v336 = vpop.xlane.xlu0 %335
  %v337 = vsel %vm80, %v328, 0.0
  %338 = vadd.xlane.f32.xlu0 %v337
  %v339 = vpop.xlane.xlu0 %338
  %v340 = vsel %vm80, %v330, 0.0
  %341 = vadd.xlane.f32.xlu0 %v340
  %v342 = vpop.xlane.xlu0 %341
  %v343 = vrcp.pop %v333
  %v344 = vrcp.pop %v336
  %v345 = vrcp.pop %v339
  %v346 = vrcp.pop %v342
  %v347 = vmul.f32 %v324, %v343
  %v348 = vmul.f32 %v326, %v344
  %v349 = vmul.f32 %v328, %v345
  %v350 = vmul.f32 %v330, %v346
  %351 = vrot.lane.b32.xlu0 %v232, 64
  %v352 = vpop.permute.xlu0 %351
  %353 = vrot.lane.b32.xlu0 %v234, 64
  %v354 = vpop.permute.xlu0 %353
  %355 = vrot.lane.b32.xlu0 %v237, 64
  %v356 = vpop.permute.xlu0 %355
  %357 = vrot.lane.b32.xlu0 %v239, 64
  %v358 = vpop.permute.xlu0 %357
  %v364 = vsel %vm80, %v347, 0
  %v367 = vsel %vm80, %v348, 0
  %v370 = vsel %vm80, %v349, 0
  %v373 = vsel %vm80, %v350, 0
  %375 = vmatpush.msra.mxu0 0.0
  %376 = vmatpush.msra.mxu0 0.0
  %377 = vmatpush.msra.mxu0 0.0
  %378 = vmatpush.msra.mxu0 0.0
  %379 = vmatpush.msra.mxu0 0.0
  %380 = vmatpush.msra.mxu0 0.0
  %381 = vmatpush.msra.mxu0 0.0
  %382 = vmatpush.msra.mxu0 0.0
  %383 = vmatpush.msra.mxu0 0.0
  %384 = vmatpush.msra.mxu0 0.0
  %385 = vmatpush.msra.mxu0 0.0
  %386 = vmatpush.msra.mxu0 0.0
  %387 = vmatpush.msra.mxu0 %v358
  %388 = vmatpush.msra.mxu0 %v356
  %389 = vmatpush.msra.mxu0 %v354
  %390 = vmatpush.msra.mxu0 %v352
  %391 = vmatmul.f32.gmra.mxu0 %v364
  %v392 = vpop.f32.mrf.mxu0
  %v393 = vadd.f32 0.0, %v392
  %394 = vmatmul.f32.gmra.mxu0 %v367
  %v395 = vpop.f32.mrf.mxu0
  %v396 = vadd.f32 0.0, %v395
  %397 = vmatmul.f32.gmra.mxu0 %v370
  %v398 = vpop.f32.mrf.mxu0
  %v399 = vadd.f32 0.0, %v398
  %400 = vmatmul.f32.gmra.mxu0 %v373
  %v401 = vpop.f32.mrf.mxu0
  %v402 = vadd.f32 0.0, %v401
  %403 = vdwg.mxu0
  %404 = vrot.lane.b32.xlu0 %v241, 112
  %v405 = vpop.permute.xlu0 %404
  %406 = vrot.lane.b32.xlu0 %v242, 112
  %v407 = vpop.permute.xlu0 %406
  %408 = vrot.lane.b32.xlu0 %v243, 112
  %v409 = vpop.permute.xlu0 %408
  %410 = vrot.lane.b32.xlu0 %v244, 112
  %v411 = vpop.permute.xlu0 %410
  %412 = vrot.lane.b32.xlu0 %v232, 80
  %v413 = vpop.permute.xlu0 %412
  %414 = vrot.lane.b32.xlu0 %v234, 80
  %v415 = vpop.permute.xlu0 %414
  %416 = vrot.lane.b32.xlu0 %v237, 80
  %v417 = vpop.permute.xlu0 %416
  %418 = vrot.lane.b32.xlu0 %v239, 80
  %v419 = vpop.permute.xlu0 %418
  %v420 = vsel %vm257, %v405, 0
  %v422 = vsel %vm257, %v407, 0
  %v424 = vsel %vm257, %v409, 0
  %v426 = vsel %vm257, %v411, 0
  %v428 = vsel %vm257, %v413, 0
  %v430 = vsel %vm257, %v415, 0
  %v432 = vsel %vm257, %v417, 0
  %v434 = vsel %vm257, %v419, 0
  %436 = vmatpush.xpose.msra.mxu0 0.0
  %437 = vmatpush.xpose.msra.mxu0 0.0
  %438 = vmatpush.xpose.msra.mxu0 0.0
  %439 = vmatpush.xpose.msra.mxu0 0.0
  %440 = vmatpush.xpose.msra.mxu0 0.0
  %441 = vmatpush.xpose.msra.mxu0 0.0
  %442 = vmatpush.xpose.msra.mxu0 0.0
  %443 = vmatpush.xpose.msra.mxu0 0.0
  %444 = vmatpush.xpose.msra.mxu0 0.0
  %445 = vmatpush.xpose.msra.mxu0 0.0
  %446 = vmatpush.xpose.msra.mxu0 0.0
  %447 = vmatpush.xpose.msra.mxu0 0.0
  %448 = vmatpush.xpose.msra.mxu0 %v434
  %449 = vmatpush.xpose.msra.mxu0 %v432
  %450 = vmatpush.xpose.msra.mxu0 %v430
  %451 = vmatpush.xpose.msra.mxu0 %v428
  %452 = vmatmul.f32.gmra.mxu0 %v420
  %v453 = vpop.f32.mrf.mxu0
  %v454 = vadd.f32 %v190, %v453
  %455 = vmatmul.f32.gmra.mxu0 %v422
  %v456 = vpop.f32.mrf.mxu0
  %v457 = vadd.f32 %v191, %v456
  %458 = vmatmul.f32.gmra.mxu0 %v424
  %v459 = vpop.f32.mrf.mxu0
  %v460 = vadd.f32 %v192, %v459
  %461 = vmatmul.f32.gmra.mxu0 %v426
  %v462 = vpop.f32.mrf.mxu0
  %v463 = vadd.f32 %v193, %v462
  %464 = vdwg.mxu0
  %v465 = vsel %vm80, %v454, -inf
  %466 = vmax.xlane.f32.xlu0 %v465
  %v467 = vpop.xlane.xlu0 %466
  %v468 = vsel %vm80, %v457, -inf
  %469 = vmax.xlane.f32.xlu0 %v468
  %v470 = vpop.xlane.xlu0 %469
  %v471 = vsel %vm80, %v460, -inf
  %472 = vmax.xlane.f32.xlu0 %v471
  %v473 = vpop.xlane.xlu0 %472
  %v474 = vsel %vm80, %v463, -inf
  %475 = vmax.xlane.f32.xlu0 %v474
  %v476 = vpop.xlane.xlu0 %475
  %v477 = vsub.f32 %v454, %v467
  %v478 = vsub.f32 %v457, %v470
  %v479 = vsub.f32 %v460, %v473
  %v480 = vsub.f32 %v463, %v476
  %v481 = vmul.f32 %v477, 1.442695
  %v482 = vpow.pop %v481
  %v483 = vmul.f32 %v478, 1.442695
  %v484 = vpow.pop %v483
  %v485 = vmul.f32 %v479, 1.442695
  %v486 = vpow.pop %v485
  %v487 = vmul.f32 %v480, 1.442695
  %v488 = vpow.pop %v487
  %v489 = vsel %vm80, %v482, 0.0
  %490 = vadd.xlane.f32.xlu0 %v489
  %v491 = vpop.xlane.xlu0 %490
  %v492 = vsel %vm80, %v484, 0.0
  %493 = vadd.xlane.f32.xlu0 %v492
  %v494 = vpop.xlane.xlu0 %493
  %v495 = vsel %vm80, %v486, 0.0
  %496 = vadd.xlane.f32.xlu0 %v495
  %v497 = vpop.xlane.xlu0 %496
  %v498 = vsel %vm80, %v488, 0.0
  %499 = vadd.xlane.f32.xlu0 %v498
  %v500 = vpop.xlane.xlu0 %499
  %v501 = vrcp.pop %v491
  %v502 = vrcp.pop %v494
  %v503 = vrcp.pop %v497
  %v504 = vrcp.pop %v500
  %v505 = vmul.f32 %v482, %v501
  %v506 = vmul.f32 %v484, %v502
  %v507 = vmul.f32 %v486, %v503
  %v508 = vmul.f32 %v488, %v504
  %509 = vrot.lane.b32.xlu0 %v232, 48
  %v510 = vpop.permute.xlu0 %509
  %511 = vrot.lane.b32.xlu0 %v234, 48
  %v512 = vpop.permute.xlu0 %511
  %513 = vrot.lane.b32.xlu0 %v237, 48
  %v514 = vpop.permute.xlu0 %513
  %515 = vrot.lane.b32.xlu0 %v239, 48
  %v516 = vpop.permute.xlu0 %515
  %v522 = vsel %vm80, %v505, 0
  %v525 = vsel %vm80, %v506, 0
  %v528 = vsel %vm80, %v507, 0
  %v531 = vsel %vm80, %v508, 0
  %533 = vmatpush.msra.mxu0 0.0
  %534 = vmatpush.msra.mxu0 0.0
  %535 = vmatpush.msra.mxu0 0.0
  %536 = vmatpush.msra.mxu0 0.0
  %537 = vmatpush.msra.mxu0 0.0
  %538 = vmatpush.msra.mxu0 0.0
  %539 = vmatpush.msra.mxu0 0.0
  %540 = vmatpush.msra.mxu0 0.0
  %541 = vmatpush.msra.mxu0 0.0
  %542 = vmatpush.msra.mxu0 0.0
  %543 = vmatpush.msra.mxu0 0.0
  %544 = vmatpush.msra.mxu0 0.0
  %545 = vmatpush.msra.mxu0 %v516
  %546 = vmatpush.msra.mxu0 %v514
  %547 = vmatpush.msra.mxu0 %v512
  %548 = vmatpush.msra.mxu0 %v510
  %549 = vmatmul.f32.gmra.mxu0 %v522
  %v550 = vpop.f32.mrf.mxu0
  %v551 = vadd.f32 0.0, %v550
  %552 = vmatmul.f32.gmra.mxu0 %v525
  %v553 = vpop.f32.mrf.mxu0
  %v554 = vadd.f32 0.0, %v553
  %555 = vmatmul.f32.gmra.mxu0 %v528
  %v556 = vpop.f32.mrf.mxu0
  %v557 = vadd.f32 0.0, %v556
  %558 = vmatmul.f32.gmra.mxu0 %v531
  %v559 = vpop.f32.mrf.mxu0
  %v560 = vadd.f32 0.0, %v559
  %561 = vdwg.mxu0
  %566 = vrot.lane.b32.xlu0 %v551, 16
  %v567 = vpop.permute.xlu0 %566
  %568 = vrot.lane.b32.xlu0 %v554, 16
  %v569 = vpop.permute.xlu0 %568
  %570 = vrot.lane.b32.xlu0 %v557, 16
  %v571 = vpop.permute.xlu0 %570
  %572 = vrot.lane.b32.xlu0 %v560, 16
  %v573 = vpop.permute.xlu0 %572
  %v578 = vsel %vm257, %v393, %v567
  %v579 = vsel %vm257, %v396, %v569
  %v580 = vsel %vm257, %v399, %v571
  %v581 = vsel %vm257, %v402, %v573
  %v582 = vpack.c.bf16 %v579, %v578
  %v583 = vpack.c.bf16 %v581, %v580
  %v584 = vld [vmem:[%s7] sm:$0xf]
  %v585 = vld [vmem:[%s7 + $0x4] sm:$0xf]
  %v586 = vld [vmem:[%s7 + $0x8] sm:$0xf]
  %v587 = vld [vmem:[%s7 + $0xc] sm:$0xf]
  %v588 = vld [vmem:[%s8] sm:$0x1]
  %v590 = vperm.slane %v588, 0
  %v596 = vunpack.c.l.b16 %v584
  %v597 = vunpack.c.l.b16 %v585
  %v598 = vunpack.c.l.b16 %v586
  %v599 = vunpack.c.l.b16 %v587
  %v600 = vpack.c.b16 %v597, %v596
  %v601 = vpack.c.b16 %v599, %v598
  %v605 = vsel %vm80, %v582, 0
  %v608 = vsel %vm80, %v583, 0
  %610 = vmatpush.bf16.msra.mxu0 0
  %611 = vmatpush.bf16.msra.mxu0 0
  %612 = vmatpush.bf16.msra.mxu0 0
  %613 = vmatpush.bf16.msra.mxu0 0
  %614 = vmatpush.bf16.msra.mxu0 0
  %615 = vmatpush.bf16.msra.mxu0 0
  %616 = vmatpush.bf16.msra.mxu0 %v601
  %617 = vmatpush.bf16.msra.mxu0 %v600
  %618 = vmatmul.bf16.gmra.mxu0 %v605
  %v619 = vpop.f32.mrf.mxu0
  %v620 = vadd.f32 %v590, %v619
  %v621 = vpop.f32.mrf.mxu0
  %v622 = vadd.f32 %v590, %v621
  %623 = vmatmul.bf16.gmra.mxu0 %v608
  %v624 = vpop.f32.mrf.mxu0
  %v625 = vadd.f32 %v590, %v624
  %v626 = vpop.f32.mrf.mxu0
  %v627 = vadd.f32 %v590, %v626
  %628 = vdwg.mxu0
  %v629 = vadd.f32 %v620, %v186
  %v630 = vadd.f32 %v622, %v187
  %v631 = vadd.f32 %v625, %v188
  %v632 = vadd.f32 %v627, %v189
  %v633 = vld [vmem:[%s9] sm:$0x1]
  %v634 = vld [vmem:[%s10] sm:$0x1]
  %v635 = vsel %vm80, %v629, 0.0
  %636 = vadd.xlane.f32.xlu0 %v635
  %v637 = vpop.xlane.xlu0 %636
  %v638 = vsel %vm80, %v630, 0.0
  %639 = vadd.xlane.f32.xlu0 %v638
  %v640 = vpop.xlane.xlu0 %639
  %v641 = vsel %vm80, %v631, 0.0
  %642 = vadd.xlane.f32.xlu0 %v641
  %v643 = vpop.xlane.xlu0 %642
  %v644 = vsel %vm80, %v632, 0.0
  %645 = vadd.xlane.f32.xlu0 %v644
  %v646 = vpop.xlane.xlu0 %645
  %v647 = vmul.f32 %v637, %v99
  %v648 = vmul.f32 %v640, %v99
  %v649 = vmul.f32 %v643, %v99
  %v650 = vmul.f32 %v646, %v99
  %v651 = vsub.f32 %v629, %v647
  %v652 = vsub.f32 %v630, %v648
  %v653 = vsub.f32 %v631, %v649
  %v654 = vsub.f32 %v632, %v650
  %v655 = vmul.f32 %v651, %v651
  %v656 = vmul.f32 %v652, %v652
  %v657 = vmul.f32 %v653, %v653
  %v658 = vmul.f32 %v654, %v654
  %v659 = vsel %vm80, %v655, 0.0
  %660 = vadd.xlane.f32.xlu0 %v659
  %v661 = vpop.xlane.xlu0 %660
  %v662 = vsel %vm80, %v656, 0.0
  %663 = vadd.xlane.f32.xlu0 %v662
  %v664 = vpop.xlane.xlu0 %663
  %v665 = vsel %vm80, %v657, 0.0
  %666 = vadd.xlane.f32.xlu0 %v665
  %v667 = vpop.xlane.xlu0 %666
  %v668 = vsel %vm80, %v658, 0.0
  %669 = vadd.xlane.f32.xlu0 %v668
  %v670 = vpop.xlane.xlu0 %669
  %v671 = vmul.f32 %v661, %v99
  %v672 = vmul.f32 %v664, %v99
  %v673 = vmul.f32 %v667, %v99
  %v674 = vmul.f32 %v670, %v99
  %v675 = vadd.f32 %v671, 1e-12
  %v676 = vadd.f32 %v672, 1e-12
  %v677 = vadd.f32 %v673, 1e-12
  %v678 = vadd.f32 %v674, 1e-12
  %v679 = vrsqrt.pop %v675
  %v680 = vmul.f32 %v679, %v675
  %v681 = vmul.f32 %v680, %v679
  %v682 = vmul.f32 0.5, %v681
  %v683 = vsub.f32 1.5, %v682
  %v684 = vmul.f32 %v679, %v683
  %vm685 = vweird.f32 %v675
  %vm686 = vweird.f32 %v679
  %vm687 = vmor %vm685, %vm686
  %v688 = vsel %vm687, %v679, %v684
  %v689 = vrsqrt.pop %v676
  %v690 = vmul.f32 %v689, %v676
  %v691 = vmul.f32 %v690, %v689
  %v692 = vmul.f32 0.5, %v691
  %v693 = vsub.f32 1.5, %v692
  %v694 = vmul.f32 %v689, %v693
  %vm695 = vweird.f32 %v676
  %vm696 = vweird.f32 %v689
  %vm697 = vmor %vm695, %vm696
  %v698 = vsel %vm697, %v689, %v694
  %v699 = vrsqrt.pop %v677
  %v700 = vmul.f32 %v699, %v677
  %v701 = vmul.f32 %v700, %v699
  %v702 = vmul.f32 0.5, %v701
  %v703 = vsub.f32 1.5, %v702
  %v704 = vmul.f32 %v699, %v703
  %vm705 = vweird.f32 %v677
  %vm706 = vweird.f32 %v699
  %vm707 = vmor %vm705, %vm706
  %v708 = vsel %vm707, %v699, %v704
  %v709 = vrsqrt.pop %v678
  %v710 = vmul.f32 %v709, %v678
  %v711 = vmul.f32 %v710, %v709
  %v712 = vmul.f32 0.5, %v711
  %v713 = vsub.f32 1.5, %v712
  %v714 = vmul.f32 %v709, %v713
  %vm715 = vweird.f32 %v678
  %vm716 = vweird.f32 %v709
  %vm717 = vmor %vm715, %vm716
  %v718 = vsel %vm717, %v709, %v714
  %v719 = vmul.f32 %v651, %v688
  %v720 = vmul.f32 %v652, %v698
  %v721 = vmul.f32 %v653, %v708
  %v722 = vmul.f32 %v654, %v718
  %v724 = vperm.slane %v633, 0
  %v726 = vmul.f32 %v719, %v724
  %v727 = vmul.f32 %v720, %v724
  %v728 = vmul.f32 %v721, %v724
  %v729 = vmul.f32 %v722, %v724
  %v731 = vperm.slane %v634, 0
  %v733 = vadd.f32 %v726, %v731
  %v734 = vadd.f32 %v727, %v731
  %v735 = vadd.f32 %v728, %v731
  %v736 = vadd.f32 %v729, %v731
  %v737 = vpack.c.bf16 %v734, %v733
  %v738 = vpack.c.bf16 %v736, %v735
  %v739 = vld [vmem:[%s11] sm:$0xf]
  %v740 = vld [vmem:[%s11 + $0x4] sm:$0xf]
  %v741 = vld [vmem:[%s11 + $0x8] sm:$0xf]
  %v742 = vld [vmem:[%s11 + $0xc] sm:$0xf]
  %v743 = vld [vmem:[%s12] sm:$0x1]
  %v745 = vperm.slane %v743, 0
  %v751 = vunpack.c.l.b16 %v739
  %v752 = vunpack.c.l.b16 %v740
  %v753 = vunpack.c.l.b16 %v741
  %v754 = vunpack.c.l.b16 %v742
  %v755 = vpack.c.b16 %v752, %v751
  %v756 = vpack.c.b16 %v754, %v753
  %v760 = vsel %vm80, %v737, 0
  %v763 = vsel %vm80, %v738, 0
  %765 = vmatpush.bf16.msra.mxu0 0
  %766 = vmatpush.bf16.msra.mxu0 0
  %767 = vmatpush.bf16.msra.mxu0 0
  %768 = vmatpush.bf16.msra.mxu0 0
  %769 = vmatpush.bf16.msra.mxu0 0
  %770 = vmatpush.bf16.msra.mxu0 0
  %771 = vmatpush.bf16.msra.mxu0 %v756
  %772 = vmatpush.bf16.msra.mxu0 %v755
  %773 = vmatmul.bf16.gmra.mxu0 %v760
  %v774 = vpop.f32.mrf.mxu0
  %v775 = vadd.f32 %v745, %v774
  %v776 = vpop.f32.mrf.mxu0
  %v777 = vadd.f32 %v745, %v776
  %778 = vmatmul.bf16.gmra.mxu0 %v763
  %v779 = vpop.f32.mrf.mxu0
  %v780 = vadd.f32 %v745, %v779
  %v781 = vpop.f32.mrf.mxu0
  %v782 = vadd.f32 %v745, %v781
  %783 = vdwg.mxu0
  %v784 = vmul.f32 %v775, %v775
  %v785 = vmul.f32 %v777, %v777
  %v786 = vmul.f32 %v780, %v780
  %v787 = vmul.f32 %v782, %v782
  %v788 = vmul.f32 %v775, %v784
  %v789 = vmul.f32 %v777, %v785
  %v790 = vmul.f32 %v780, %v786
  %v791 = vmul.f32 %v782, %v787
  %v792 = vmul.f32 %v788, 0.044715
  %v793 = vmul.f32 %v789, 0.044715
  %v794 = vmul.f32 %v790, 0.044715
  %v795 = vmul.f32 %v791, 0.044715
  %v796 = vadd.f32 %v775, %v792
  %v797 = vadd.f32 %v777, %v793
  %v798 = vadd.f32 %v780, %v794
  %v799 = vadd.f32 %v782, %v795
  %v800 = vmul.f32 %v796, 0.7978846
  %v801 = vmul.f32 %v797, 0.7978846
  %v802 = vmul.f32 %v798, 0.7978846
  %v803 = vmul.f32 %v799, 0.7978846
  %v804 = vtanh.pop %v800
  %v805 = vtanh.pop %v801
  %v806 = vtanh.pop %v802
  %v807 = vtanh.pop %v803
  %v808 = vadd.f32 %v804, 1.0
  %v809 = vadd.f32 %v805, 1.0
  %v810 = vadd.f32 %v806, 1.0
  %v811 = vadd.f32 %v807, 1.0
  %v812 = vmul.f32 %v808, 0.5
  %v813 = vmul.f32 %v809, 0.5
  %v814 = vmul.f32 %v810, 0.5
  %v815 = vmul.f32 %v811, 0.5
  %v816 = vmul.f32 %v775, %v812
  %v817 = vmul.f32 %v777, %v813
  %v818 = vmul.f32 %v780, %v814
  %v819 = vmul.f32 %v782, %v815
  %v820 = vpack.c.bf16 %v817, %v816
  %v821 = vpack.c.bf16 %v819, %v818
  %v822 = vld [vmem:[%s13] sm:$0xf]
  %v823 = vld [vmem:[%s13 + $0x4] sm:$0xf]
  %v824 = vld [vmem:[%s13 + $0x8] sm:$0xf]
  %v825 = vld [vmem:[%s13 + $0xc] sm:$0xf]
  %v826 = vld [vmem:[%s13 + $0x10] sm:$0xf]
  %v827 = vld [vmem:[%s13 + $0x14] sm:$0xf]
  %v828 = vld [vmem:[%s13 + $0x18] sm:$0xf]
  %v829 = vld [vmem:[%s13 + $0x1c] sm:$0xf]
  %v830 = vld [vmem:[%s14] sm:$0x1]
  %v832 = vperm.slane %v830, 0
  %v842 = vunpack.c.l.b16 %v822
  %v843 = vunpack.c.l.b16 %v823
  %v844 = vunpack.c.l.b16 %v824
  %v845 = vunpack.c.l.b16 %v825
  %v846 = vunpack.c.l.b16 %v826
  %v847 = vunpack.c.l.b16 %v827
  %v848 = vunpack.c.l.b16 %v828
  %v849 = vunpack.c.l.b16 %v829
  %v850 = vpack.c.b16 %v843, %v842
  %v851 = vpack.c.b16 %v845, %v844
  %v852 = vpack.c.b16 %v847, %v846
  %v853 = vpack.c.b16 %v849, %v848
  %vm858 = vcmask 523264
  %v860 = vsel %vm858, %v820, 0
  %v863 = vsel %vm858, %v821, 0
  %865 = vmatpush.bf16.msra.mxu0 0
  %866 = vmatpush.bf16.msra.mxu0 0
  %867 = vmatpush.bf16.msra.mxu0 0
  %868 = vmatpush.bf16.msra.mxu0 0
  %869 = vmatpush.bf16.msra.mxu0 %v853
  %870 = vmatpush.bf16.msra.mxu0 %v852
  %871 = vmatpush.bf16.msra.mxu0 %v851
  %872 = vmatpush.bf16.msra.mxu0 %v850
  %873 = vmatmul.bf16.gmra.mxu0 %v860
  %v874 = vpop.f32.mrf.mxu0
  %v875 = vadd.f32 %v832, %v874
  %v876 = vpop.f32.mrf.mxu0
  %v877 = vadd.f32 %v832, %v876
  %878 = vmatmul.bf16.gmra.mxu0 %v863
  %v879 = vpop.f32.mrf.mxu0
  %v880 = vadd.f32 %v832, %v879
  %v881 = vpop.f32.mrf.mxu0
  %v882 = vadd.f32 %v832, %v881
  %883 = vdwg.mxu0
  %v884 = vadd.f32 %v875, %v733
  %v885 = vadd.f32 %v877, %v734
  %v886 = vadd.f32 %v880, %v735
  %v887 = vadd.f32 %v882, %v736
  %v888 = vld [vmem:[%s15] sm:$0x1]
  %v889 = vld [vmem:[%s16] sm:$0x1]
  %v890 = vsel %vm80, %v884, 0.0
  %891 = vadd.xlane.f32.xlu0 %v890
  %v892 = vpop.xlane.xlu0 %891
  %v893 = vsel %vm80, %v885, 0.0
  %894 = vadd.xlane.f32.xlu0 %v893
  %v895 = vpop.xlane.xlu0 %894
  %v896 = vsel %vm80, %v886, 0.0
  %897 = vadd.xlane.f32.xlu0 %v896
  %v898 = vpop.xlane.xlu0 %897
  %v899 = vsel %vm80, %v887, 0.0
  %900 = vadd.xlane.f32.xlu0 %v899
  %v901 = vpop.xlane.xlu0 %900
  %v902 = vmul.f32 %v892, %v99
  %v903 = vmul.f32 %v895, %v99
  %v904 = vmul.f32 %v898, %v99
  %v905 = vmul.f32 %v901, %v99
  %v906 = vsub.f32 %v884, %v902
  %v907 = vsub.f32 %v885, %v903
  %v908 = vsub.f32 %v886, %v904
  %v909 = vsub.f32 %v887, %v905
  %v910 = vmul.f32 %v906, %v906
  %v911 = vmul.f32 %v907, %v907
  %v912 = vmul.f32 %v908, %v908
  %v913 = vmul.f32 %v909, %v909
  %v914 = vsel %vm80, %v910, 0.0
  %915 = vadd.xlane.f32.xlu0 %v914
  %v916 = vpop.xlane.xlu0 %915
  %v917 = vsel %vm80, %v911, 0.0
  %918 = vadd.xlane.f32.xlu0 %v917
  %v919 = vpop.xlane.xlu0 %918
  %v920 = vsel %vm80, %v912, 0.0
  %921 = vadd.xlane.f32.xlu0 %v920
  %v922 = vpop.xlane.xlu0 %921
  %v923 = vsel %vm80, %v913, 0.0
  %924 = vadd.xlane.f32.xlu0 %v923
  %v925 = vpop.xlane.xlu0 %924
  %v926 = vmul.f32 %v916, %v99
  %v927 = vmul.f32 %v919, %v99
  %v928 = vmul.f32 %v922, %v99
  %v929 = vmul.f32 %v925, %v99
  %v930 = vadd.f32 %v926, 1e-12
  %v931 = vadd.f32 %v927, 1e-12
  %v932 = vadd.f32 %v928, 1e-12
  %v933 = vadd.f32 %v929, 1e-12
  %v934 = vrsqrt.pop %v930
  %v935 = vmul.f32 %v934, %v930
  %v936 = vmul.f32 %v935, %v934
  %v937 = vmul.f32 0.5, %v936
  %v938 = vsub.f32 1.5, %v937
  %v939 = vmul.f32 %v934, %v938
  %vm940 = vweird.f32 %v930
  %vm941 = vweird.f32 %v934
  %vm942 = vmor %vm940, %vm941
  %v943 = vsel %vm942, %v934, %v939
  %v944 = vrsqrt.pop %v931
  %v945 = vmul.f32 %v944, %v931
  %v946 = vmul.f32 %v945, %v944
  %v947 = vmul.f32 0.5, %v946
  %v948 = vsub.f32 1.5, %v947
  %v949 = vmul.f32 %v944, %v948
  %vm950 = vweird.f32 %v931
  %vm951 = vweird.f32 %v944
  %vm952 = vmor %vm950, %vm951
  %v953 = vsel %vm952, %v944, %v949
  %v954 = vrsqrt.pop %v932
  %v955 = vmul.f32 %v954, %v932
  %v956 = vmul.f32 %v955, %v954
  %v957 = vmul.f32 0.5, %v956
  %v958 = vsub.f32 1.5, %v957
  %v959 = vmul.f32 %v954, %v958
  %vm960 = vweird.f32 %v932
  %vm961 = vweird.f32 %v954
  %vm962 = vmor %vm960, %vm961
  %v963 = vsel %vm962, %v954, %v959
  %v964 = vrsqrt.pop %v933
  %v965 = vmul.f32 %v964, %v933
  %v966 = vmul.f32 %v965, %v964
  %v967 = vmul.f32 0.5, %v966
  %v968 = vsub.f32 1.5, %v967
  %v969 = vmul.f32 %v964, %v968
  %vm970 = vweird.f32 %v933
  %vm971 = vweird.f32 %v964
  %vm972 = vmor %vm970, %vm971
  %v973 = vsel %vm972, %v964, %v969
  %v974 = vmul.f32 %v906, %v943
  %v975 = vmul.f32 %v907, %v953
  %v976 = vmul.f32 %v908, %v963
  %v977 = vmul.f32 %v909, %v973
  %v979 = vperm.slane %v888, 0
  %v981 = vmul.f32 %v974, %v979
  %v982 = vmul.f32 %v975, %v979
  %v983 = vmul.f32 %v976, %v979
  %v984 = vmul.f32 %v977, %v979
  %v986 = vperm.slane %v889, 0
  %v988 = vadd.f32 %v981, %v986
  %v989 = vadd.f32 %v982, %v986
  %v990 = vadd.f32 %v983, %v986
  %v991 = vadd.f32 %v984, %v986
  %v992 = vpack.c.bf16 %v989, %v988
  %v993 = vpack.c.bf16 %v991, %v990
  %s994 = scalar_lea.vmem %s5, 16
  %v995 = vld [vmem:[%s994] sm:$0xf]
  %v996 = vld [vmem:[%s994 + $0x4] sm:$0xf]
  %v997 = vld [vmem:[%s994 + $0x8] sm:$0xf]
  %v998 = vld [vmem:[%s994 + $0xc] sm:$0xf]
  %s999 = scalar_lea.vmem %s6, 1
  %v1000 = vld [vmem:[%s999] sm:$0x1]
  %v1002 = vperm.slane %v1000, 0
  %v1008 = vunpack.c.l.b16 %v995
  %v1009 = vunpack.c.l.b16 %v996
  %v1010 = vunpack.c.l.b16 %v997
  %v1011 = vunpack.c.l.b16 %v998
  %v1012 = vpack.c.b16 %v1009, %v1008
  %v1013 = vpack.c.b16 %v1011, %v1010
  %v1017 = vsel %vm80, %v992, 0
  %v1020 = vsel %vm80, %v993, 0
  %1022 = vmatpush.bf16.msra.mxu0 0
  %1023 = vmatpush.bf16.msra.mxu0 0
  %1024 = vmatpush.bf16.msra.mxu0 0
  %1025 = vmatpush.bf16.msra.mxu0 0
  %1026 = vmatpush.bf16.msra.mxu0 0
  %1027 = vmatpush.bf16.msra.mxu0 0
  %1028 = vmatpush.bf16.msra.mxu0 %v1013
  %1029 = vmatpush.bf16.msra.mxu0 %v1012
  %1030 = vmatmul.bf16.gmra.mxu0 %v1017
  %v1031 = vpop.f32.mrf.mxu0
  %v1032 = vadd.f32 %v1002, %v1031
  %v1033 = vpop.f32.mrf.mxu0
  %v1034 = vadd.f32 %v1002, %v1033
  %1035 = vmatmul.bf16.gmra.mxu0 %v1020
  %v1036 = vpop.f32.mrf.mxu0
  %v1037 = vadd.f32 %v1002, %v1036
  %v1038 = vpop.f32.mrf.mxu0
  %v1039 = vadd.f32 %v1002, %v1038
  %1040 = vdwg.mxu0
  %v1041 = vmul.f32 %v1032, 0.25
  %v1042 = vmul.f32 %v1034, 0.25
  %v1043 = vmul.f32 %v1037, 0.25
  %v1044 = vmul.f32 %v1039, 0.25
  %1049 = vrot.lane.b32.xlu0 %v1032, 96
  %v1050 = vpop.permute.xlu0 %1049
  %1051 = vrot.lane.b32.xlu0 %v1034, 96
  %v1052 = vpop.permute.xlu0 %1051
  %1053 = vrot.lane.b32.xlu0 %v1037, 96
  %v1054 = vpop.permute.xlu0 %1053
  %1055 = vrot.lane.b32.xlu0 %v1039, 96
  %v1056 = vpop.permute.xlu0 %1055
  %v1058 = vsel %vm257, %v1041, 0
  %v1061 = vsel %vm257, %v1042, 0
  %v1064 = vsel %vm257, %v1043, 0
  %v1067 = vsel %vm257, %v1044, 0
  %v1069 = vsel %vm257, %v1050, 0
  %v1071 = vsel %vm257, %v1052, 0
  %v1073 = vsel %vm257, %v1054, 0
  %v1075 = vsel %vm257, %v1056, 0
  %1077 = vmatpush.xpose.msra.mxu0 0.0
  %1078 = vmatpush.xpose.msra.mxu0 0.0
  %1079 = vmatpush.xpose.msra.mxu0 0.0
  %1080 = vmatpush.xpose.msra.mxu0 0.0
  %1081 = vmatpush.xpose.msra.mxu0 0.0
  %1082 = vmatpush.xpose.msra.mxu0 0.0
  %1083 = vmatpush.xpose.msra.mxu0 0.0
  %1084 = vmatpush.xpose.msra.mxu0 0.0
  %1085 = vmatpush.xpose.msra.mxu0 0.0
  %1086 = vmatpush.xpose.msra.mxu0 0.0
  %1087 = vmatpush.xpose.msra.mxu0 0.0
  %1088 = vmatpush.xpose.msra.mxu0 0.0
  %1089 = vmatpush.xpose.msra.mxu0 %v1075
  %1090 = vmatpush.xpose.msra.mxu0 %v1073
  %1091 = vmatpush.xpose.msra.mxu0 %v1071
  %1092 = vmatpush.xpose.msra.mxu0 %v1069
  %1093 = vmatmul.f32.gmra.mxu0 %v1058
  %v1094 = vpop.f32.mrf.mxu0
  %v1095 = vadd.f32 %v190, %v1094
  %1096 = vmatmul.f32.gmra.mxu0 %v1061
  %v1097 = vpop.f32.mrf.mxu0
  %v1098 = vadd.f32 %v191, %v1097
  %1099 = vmatmul.f32.gmra.mxu0 %v1064
  %v1100 = vpop.f32.mrf.mxu0
  %v1101 = vadd.f32 %v192, %v1100
  %1102 = vmatmul.f32.gmra.mxu0 %v1067
  %v1103 = vpop.f32.mrf.mxu0
  %v1104 = vadd.f32 %v193, %v1103
  %1105 = vdwg.mxu0
  %v1106 = vsel %vm80, %v1095, -inf
  %1107 = vmax.xlane.f32.xlu0 %v1106
  %v1108 = vpop.xlane.xlu0 %1107
  %v1109 = vsel %vm80, %v1098, -inf
  %1110 = vmax.xlane.f32.xlu0 %v1109
  %v1111 = vpop.xlane.xlu0 %1110
  %v1112 = vsel %vm80, %v1101, -inf
  %1113 = vmax.xlane.f32.xlu0 %v1112
  %v1114 = vpop.xlane.xlu0 %1113
  %v1115 = vsel %vm80, %v1104, -inf
  %1116 = vmax.xlane.f32.xlu0 %v1115
  %v1117 = vpop.xlane.xlu0 %1116
  %v1118 = vsub.f32 %v1095, %v1108
  %v1119 = vsub.f32 %v1098, %v1111
  %v1120 = vsub.f32 %v1101, %v1114
  %v1121 = vsub.f32 %v1104, %v1117
  %v1122 = vmul.f32 %v1118, 1.442695
  %v1123 = vpow.pop %v1122
  %v1124 = vmul.f32 %v1119, 1.442695
  %v1125 = vpow.pop %v1124
  %v1126 = vmul.f32 %v1120, 1.442695
  %v1127 = vpow.pop %v1126
  %v1128 = vmul.f32 %v1121, 1.442695
  %v1129 = vpow.pop %v1128
  %v1130 = vsel %vm80, %v1123, 0.0
  %1131 = vadd.xlane.f32.xlu0 %v1130
  %v1132 = vpop.xlane.xlu0 %1131
  %v1133 = vsel %vm80, %v1125, 0.0
  %1134 = vadd.xlane.f32.xlu0 %v1133
  %v1135 = vpop.xlane.xlu0 %1134
  %v1136 = vsel %vm80, %v1127, 0.0
  %1137 = vadd.xlane.f32.xlu0 %v1136
  %v1138 = vpop.xlane.xlu0 %1137
  %v1139 = vsel %vm80, %v1129, 0.0
  %1140 = vadd.xlane.f32.xlu0 %v1139
  %v1141 = vpop.xlane.xlu0 %1140
  %v1142 = vrcp.pop %v1132
  %v1143 = vrcp.pop %v1135
  %v1144 = vrcp.pop %v1138
  %v1145 = vrcp.pop %v1141
  %v1146 = vmul.f32 %v1123, %v1142
  %v1147 = vmul.f32 %v1125, %v1143
  %v1148 = vmul.f32 %v1127, %v1144
  %v1149 = vmul.f32 %v1129, %v1145
  %1150 = vrot.lane.b32.xlu0 %v1032, 64
  %v1151 = vpop.permute.xlu0 %1150
  %1152 = vrot.lane.b32.xlu0 %v1034, 64
  %v1153 = vpop.permute.xlu0 %1152
  %1154 = vrot.lane.b32.xlu0 %v1037, 64
  %v1155 = vpop.permute.xlu0 %1154
  %1156 = vrot.lane.b32.xlu0 %v1039, 64
  %v1157 = vpop.permute.xlu0 %1156
  %v1163 = vsel %vm80, %v1146, 0
  %v1166 = vsel %vm80, %v1147, 0
  %v1169 = vsel %vm80, %v1148, 0
  %v1172 = vsel %vm80, %v1149, 0
  %1174 = vmatpush.msra.mxu0 0.0
  %1175 = vmatpush.msra.mxu0 0.0
  %1176 = vmatpush.msra.mxu0 0.0
  %1177 = vmatpush.msra.mxu0 0.0
  %1178 = vmatpush.msra.mxu0 0.0
  %1179 = vmatpush.msra.mxu0 0.0
  %1180 = vmatpush.msra.mxu0 0.0
  %1181 = vmatpush.msra.mxu0 0.0
  %1182 = vmatpush.msra.mxu0 0.0
  %1183 = vmatpush.msra.mxu0 0.0
  %1184 = vmatpush.msra.mxu0 0.0
  %1185 = vmatpush.msra.mxu0 0.0
  %1186 = vmatpush.msra.mxu0 %v1157
  %1187 = vmatpush.msra.mxu0 %v1155
  %1188 = vmatpush.msra.mxu0 %v1153
  %1189 = vmatpush.msra.mxu0 %v1151
  %1190 = vmatmul.f32.gmra.mxu0 %v1163
  %v1191 = vpop.f32.mrf.mxu0
  %v1192 = vadd.f32 0.0, %v1191
  %1193 = vmatmul.f32.gmra.mxu0 %v1166
  %v1194 = vpop.f32.mrf.mxu0
  %v1195 = vadd.f32 0.0, %v1194
  %1196 = vmatmul.f32.gmra.mxu0 %v1169
  %v1197 = vpop.f32.mrf.mxu0
  %v1198 = vadd.f32 0.0, %v1197
  %1199 = vmatmul.f32.gmra.mxu0 %v1172
  %v1200 = vpop.f32.mrf.mxu0
  %v1201 = vadd.f32 0.0, %v1200
  %1202 = vdwg.mxu0
  %1203 = vrot.lane.b32.xlu0 %v1041, 112
  %v1204 = vpop.permute.xlu0 %1203
  %1205 = vrot.lane.b32.xlu0 %v1042, 112
  %v1206 = vpop.permute.xlu0 %1205
  %1207 = vrot.lane.b32.xlu0 %v1043, 112
  %v1208 = vpop.permute.xlu0 %1207
  %1209 = vrot.lane.b32.xlu0 %v1044, 112
  %v1210 = vpop.permute.xlu0 %1209
  %1211 = vrot.lane.b32.xlu0 %v1032, 80
  %v1212 = vpop.permute.xlu0 %1211
  %1213 = vrot.lane.b32.xlu0 %v1034, 80
  %v1214 = vpop.permute.xlu0 %1213
  %1215 = vrot.lane.b32.xlu0 %v1037, 80
  %v1216 = vpop.permute.xlu0 %1215
  %1217 = vrot.lane.b32.xlu0 %v1039, 80
  %v1218 = vpop.permute.xlu0 %1217
  %v1219 = vsel %vm257, %v1204, 0
  %v1221 = vsel %vm257, %v1206, 0
  %v1223 = vsel %vm257, %v1208, 0
  %v1225 = vsel %vm257, %v1210, 0
  %v1227 = vsel %vm257, %v1212, 0
  %v1229 = vsel %vm257, %v1214, 0
  %v1231 = vsel %vm257, %v1216, 0
  %v1233 = vsel %vm257, %v1218, 0
  %1235 = vmatpush.xpose.msra.mxu0 0.0
  %1236 = vmatpush.xpose.msra.mxu0 0.0
  %1237 = vmatpush.xpose.msra.mxu0 0.0
  %1238 = vmatpush.xpose.msra.mxu0 0.0
  %1239 = vmatpush.xpose.msra.mxu0 0.0
  %1240 = vmatpush.xpose.msra.mxu0 0.0
  %1241 = vmatpush.xpose.msra.mxu0 0.0
  %1242 = vmatpush.xpose.msra.mxu0 0.0
  %1243 = vmatpush.xpose.msra.mxu0 0.0
  %1244 = vmatpush.xpose.msra.mxu0 0.0
  %1245 = vmatpush.xpose.msra.mxu0 0.0
  %1246 = vmatpush.xpose.msra.mxu0 0.0
  %1247 = vmatpush.xpose.msra.mxu0 %v1233
  %1248 = vmatpush.xpose.msra.mxu0 %v1231
  %1249 = vmatpush.xpose.msra.mxu0 %v1229
  %1250 = vmatpush.xpose.msra.mxu0 %v1227
  %1251 = vmatmul.f32.gmra.mxu0 %v1219
  %v1252 = vpop.f32.mrf.mxu0
  %v1253 = vadd.f32 %v190, %v1252
  %1254 = vmatmul.f32.gmra.mxu0 %v1221
  %v1255 = vpop.f32.mrf.mxu0
  %v1256 = vadd.f32 %v191, %v1255
  %1257 = vmatmul.f32.gmra.mxu0 %v1223
  %v1258 = vpop.f32.mrf.mxu0
  %v1259 = vadd.f32 %v192, %v1258
  %1260 = vmatmul.f32.gmra.mxu0 %v1225
  %v1261 = vpop.f32.mrf.mxu0
  %v1262 = vadd.f32 %v193, %v1261
  %1263 = vdwg.mxu0
  %v1264 = vsel %vm80, %v1253, -inf
  %1265 = vmax.xlane.f32.xlu0 %v1264
  %v1266 = vpop.xlane.xlu0 %1265
  %v1267 = vsel %vm80, %v1256, -inf
  %1268 = vmax.xlane.f32.xlu0 %v1267
  %v1269 = vpop.xlane.xlu0 %1268
  %v1270 = vsel %vm80, %v1259, -inf
  %1271 = vmax.xlane.f32.xlu0 %v1270
  %v1272 = vpop.xlane.xlu0 %1271
  %v1273 = vsel %vm80, %v1262, -inf
  %1274 = vmax.xlane.f32.xlu0 %v1273
  %v1275 = vpop.xlane.xlu0 %1274
  %v1276 = vsub.f32 %v1253, %v1266
  %v1277 = vsub.f32 %v1256, %v1269
  %v1278 = vsub.f32 %v1259, %v1272
  %v1279 = vsub.f32 %v1262, %v1275
  %v1280 = vmul.f32 %v1276, 1.442695
  %v1281 = vpow.pop %v1280
  %v1282 = vmul.f32 %v1277, 1.442695
  %v1283 = vpow.pop %v1282
  %v1284 = vmul.f32 %v1278, 1.442695
  %v1285 = vpow.pop %v1284
  %v1286 = vmul.f32 %v1279, 1.442695
  %v1287 = vpow.pop %v1286
  %v1288 = vsel %vm80, %v1281, 0.0
  %1289 = vadd.xlane.f32.xlu0 %v1288
  %v1290 = vpop.xlane.xlu0 %1289
  %v1291 = vsel %vm80, %v1283, 0.0
  %1292 = vadd.xlane.f32.xlu0 %v1291
  %v1293 = vpop.xlane.xlu0 %1292
  %v1294 = vsel %vm80, %v1285, 0.0
  %1295 = vadd.xlane.f32.xlu0 %v1294
  %v1296 = vpop.xlane.xlu0 %1295
  %v1297 = vsel %vm80, %v1287, 0.0
  %1298 = vadd.xlane.f32.xlu0 %v1297
  %v1299 = vpop.xlane.xlu0 %1298
  %v1300 = vrcp.pop %v1290
  %v1301 = vrcp.pop %v1293
  %v1302 = vrcp.pop %v1296
  %v1303 = vrcp.pop %v1299
  %v1304 = vmul.f32 %v1281, %v1300
  %v1305 = vmul.f32 %v1283, %v1301
  %v1306 = vmul.f32 %v1285, %v1302
  %v1307 = vmul.f32 %v1287, %v1303
  %1308 = vrot.lane.b32.xlu0 %v1032, 48
  %v1309 = vpop.permute.xlu0 %1308
  %1310 = vrot.lane.b32.xlu0 %v1034, 48
  %v1311 = vpop.permute.xlu0 %1310
  %1312 = vrot.lane.b32.xlu0 %v1037, 48
  %v1313 = vpop.permute.xlu0 %1312
  %1314 = vrot.lane.b32.xlu0 %v1039, 48
  %v1315 = vpop.permute.xlu0 %1314
  %v1321 = vsel %vm80, %v1304, 0
  %v1324 = vsel %vm80, %v1305, 0
  %v1327 = vsel %vm80, %v1306, 0
  %v1330 = vsel %vm80, %v1307, 0
  %1332 = vmatpush.msra.mxu0 0.0
  %1333 = vmatpush.msra.mxu0 0.0
  %1334 = vmatpush.msra.mxu0 0.0
  %1335 = vmatpush.msra.mxu0 0.0
  %1336 = vmatpush.msra.mxu0 0.0
  %1337 = vmatpush.msra.mxu0 0.0
  %1338 = vmatpush.msra.mxu0 0.0
  %1339 = vmatpush.msra.mxu0 0.0
  %1340 = vmatpush.msra.mxu0 0.0
  %1341 = vmatpush.msra.mxu0 0.0
  %1342 = vmatpush.msra.mxu0 0.0
  %1343 = vmatpush.msra.mxu0 0.0
  %1344 = vmatpush.msra.mxu0 %v1315
  %1345 = vmatpush.msra.mxu0 %v1313
  %1346 = vmatpush.msra.mxu0 %v1311
  %1347 = vmatpush.msra.mxu0 %v1309
  %1348 = vmatmul.f32.gmra.mxu0 %v1321
  %v1349 = vpop.f32.mrf.mxu0
  %v1350 = vadd.f32 0.0, %v1349
  %1351 = vmatmul.f32.gmra.mxu0 %v1324
  %v1352 = vpop.f32.mrf.mxu0
  %v1353 = vadd.f32 0.0, %v1352
  %1354 = vmatmul.f32.gmra.mxu0 %v1327
  %v1355 = vpop.f32.mrf.mxu0
  %v1356 = vadd.f32 0.0, %v1355
  %1357 = vmatmul.f32.gmra.mxu0 %v1330
  %v1358 = vpop.f32.mrf.mxu0
  %v1359 = vadd.f32 0.0, %v1358
  %1360 = vdwg.mxu0
  %1365 = vrot.lane.b32.xlu0 %v1350, 16
  %v1366 = vpop.permute.xlu0 %1365
  %1367 = vrot.lane.b32.xlu0 %v1353, 16
  %v1368 = vpop.permute.xlu0 %1367
  %1369 = vrot.lane.b32.xlu0 %v1356, 16
  %v1370 = vpop.permute.xlu0 %1369
  %1371 = vrot.lane.b32.xlu0 %v1359, 16
  %v1372 = vpop.permute.xlu0 %1371
  %v1377 = vsel %vm257, %v1192, %v1366
  %v1378 = vsel %vm257, %v1195, %v1368
  %v1379 = vsel %vm257, %v1198, %v1370
  %v1380 = vsel %vm257, %v1201, %v1372
  %v1381 = vpack.c.bf16 %v1378, %v1377
  %v1382 = vpack.c.bf16 %v1380, %v1379
  %s1383 = scalar_lea.vmem %s7, 16
  %v1384 = vld [vmem:[%s1383] sm:$0xf]
  %v1385 = vld [vmem:[%s1383 + $0x4] sm:$0xf]
  %v1386 = vld [vmem:[%s1383 + $0x8] sm:$0xf]
  %v1387 = vld [vmem:[%s1383 + $0xc] sm:$0xf]
  %s1388 = scalar_lea.vmem %s8, 1
  %v1389 = vld [vmem:[%s1388] sm:$0x1]
  %v1391 = vperm.slane %v1389, 0
  %v1397 = vunpack.c.l.b16 %v1384
  %v1398 = vunpack.c.l.b16 %v1385
  %v1399 = vunpack.c.l.b16 %v1386
  %v1400 = vunpack.c.l.b16 %v1387
  %v1401 = vpack.c.b16 %v1398, %v1397
  %v1402 = vpack.c.b16 %v1400, %v1399
  %v1406 = vsel %vm80, %v1381, 0
  %v1409 = vsel %vm80, %v1382, 0
  %1411 = vmatpush.bf16.msra.mxu0 0
  %1412 = vmatpush.bf16.msra.mxu0 0
  %1413 = vmatpush.bf16.msra.mxu0 0
  %1414 = vmatpush.bf16.msra.mxu0 0
  %1415 = vmatpush.bf16.msra.mxu0 0
  %1416 = vmatpush.bf16.msra.mxu0 0
  %1417 = vmatpush.bf16.msra.mxu0 %v1402
  %1418 = vmatpush.bf16.msra.mxu0 %v1401
  %1419 = vmatmul.bf16.gmra.mxu0 %v1406
  %v1420 = vpop.f32.mrf.mxu0
  %v1421 = vadd.f32 %v1391, %v1420
  %v1422 = vpop.f32.mrf.mxu0
  %v1423 = vadd.f32 %v1391, %v1422
  %1424 = vmatmul.bf16.gmra.mxu0 %v1409
  %v1425 = vpop.f32.mrf.mxu0
  %v1426 = vadd.f32 %v1391, %v1425
  %v1427 = vpop.f32.mrf.mxu0
  %v1428 = vadd.f32 %v1391, %v1427
  %1429 = vdwg.mxu0
  %v1430 = vadd.f32 %v1421, %v988
  %v1431 = vadd.f32 %v1423, %v989
  %v1432 = vadd.f32 %v1426, %v990
  %v1433 = vadd.f32 %v1428, %v991
  %s1434 = scalar_lea.vmem %s9, 1
  %v1435 = vld [vmem:[%s1434] sm:$0x1]
  %s1436 = scalar_lea.vmem %s10, 1
  %v1437 = vld [vmem:[%s1436] sm:$0x1]
  %v1438 = vsel %vm80, %v1430, 0.0
  %1439 = vadd.xlane.f32.xlu0 %v1438
  %v1440 = vpop.xlane.xlu0 %1439
  %v1441 = vsel %vm80, %v1431, 0.0
  %1442 = vadd.xlane.f32.xlu0 %v1441
  %v1443 = vpop.xlane.xlu0 %1442
  %v1444 = vsel %vm80, %v1432, 0.0
  %1445 = vadd.xlane.f32.xlu0 %v1444
  %v1446 = vpop.xlane.xlu0 %1445
  %v1447 = vsel %vm80, %v1433, 0.0
  %1448 = vadd.xlane.f32.xlu0 %v1447
  %v1449 = vpop.xlane.xlu0 %1448
  %v1450 = vmul.f32 %v1440, %v99
  %v1451 = vmul.f32 %v1443, %v99
  %v1452 = vmul.f32 %v1446, %v99
  %v1453 = vmul.f32 %v1449, %v99
  %v1454 = vsub.f32 %v1430, %v1450
  %v1455 = vsub.f32 %v1431, %v1451
  %v1456 = vsub.f32 %v1432, %v1452
  %v1457 = vsub.f32 %v1433, %v1453
  %v1458 = vmul.f32 %v1454, %v1454
  %v1459 = vmul.f32 %v1455, %v1455
  %v1460 = vmul.f32 %v1456, %v1456
  %v1461 = vmul.f32 %v1457, %v1457
  %v1462 = vsel %vm80, %v1458, 0.0
  %1463 = vadd.xlane.f32.xlu0 %v1462
  %v1464 = vpop.xlane.xlu0 %1463
  %v1465 = vsel %vm80, %v1459, 0.0
  %1466 = vadd.xlane.f32.xlu0 %v1465
  %v1467 = vpop.xlane.xlu0 %1466
  %v1468 = vsel %vm80, %v1460, 0.0
  %1469 = vadd.xlane.f32.xlu0 %v1468
  %v1470 = vpop.xlane.xlu0 %1469
  %v1471 = vsel %vm80, %v1461, 0.0
  %1472 = vadd.xlane.f32.xlu0 %v1471
  %v1473 = vpop.xlane.xlu0 %1472
  %v1474 = vmul.f32 %v1464, %v99
  %v1475 = vmul.f32 %v1467, %v99
  %v1476 = vmul.f32 %v1470, %v99
  %v1477 = vmul.f32 %v1473, %v99
  %v1478 = vadd.f32 %v1474, 1e-12
  %v1479 = vadd.f32 %v1475, 1e-12
  %v1480 = vadd.f32 %v1476, 1e-12
  %v1481 = vadd.f32 %v1477, 1e-12
  %v1482 = vrsqrt.pop %v1478
  %v1483 = vmul.f32 %v1482, %v1478
  %v1484 = vmul.f32 %v1483, %v1482
  %v1485 = vmul.f32 0.5, %v1484
  %v1486 = vsub.f32 1.5, %v1485
  %v1487 = vmul.f32 %v1482, %v1486
  %vm1488 = vweird.f32 %v1478
  %vm1489 = vweird.f32 %v1482
  %vm1490 = vmor %vm1488, %vm1489
  %v1491 = vsel %vm1490, %v1482, %v1487
  %v1492 = vrsqrt.pop %v1479
  %v1493 = vmul.f32 %v1492, %v1479
  %v1494 = vmul.f32 %v1493, %v1492
  %v1495 = vmul.f32 0.5, %v1494
  %v1496 = vsub.f32 1.5, %v1495
  %v1497 = vmul.f32 %v1492, %v1496
  %vm1498 = vweird.f32 %v1479
  %vm1499 = vweird.f32 %v1492
  %vm1500 = vmor %vm1498, %vm1499
  %v1501 = vsel %vm1500, %v1492, %v1497
  %v1502 = vrsqrt.pop %v1480
  %v1503 = vmul.f32 %v1502, %v1480
  %v1504 = vmul.f32 %v1503, %v1502
  %v1505 = vmul.f32 0.5, %v1504
  %v1506 = vsub.f32 1.5, %v1505
  %v1507 = vmul.f32 %v1502, %v1506
  %vm1508 = vweird.f32 %v1480
  %vm1509 = vweird.f32 %v1502
  %vm1510 = vmor %vm1508, %vm1509
  %v1511 = vsel %vm1510, %v1502, %v1507
  %v1512 = vrsqrt.pop %v1481
  %v1513 = vmul.f32 %v1512, %v1481
  %v1514 = vmul.f32 %v1513, %v1512
  %v1515 = vmul.f32 0.5, %v1514
  %v1516 = vsub.f32 1.5, %v1515
  %v1517 = vmul.f32 %v1512, %v1516
  %vm1518 = vweird.f32 %v1481
  %vm1519 = vweird.f32 %v1512
  %vm1520 = vmor %vm1518, %vm1519
  %v1521 = vsel %vm1520, %v1512, %v1517
  %v1522 = vmul.f32 %v1454, %v1491
  %v1523 = vmul.f32 %v1455, %v1501
  %v1524 = vmul.f32 %v1456, %v1511
  %v1525 = vmul.f32 %v1457, %v1521
  %v1527 = vperm.slane %v1435, 0
  %v1529 = vmul.f32 %v1522, %v1527
  %v1530 = vmul.f32 %v1523, %v1527
  %v1531 = vmul.f32 %v1524, %v1527
  %v1532 = vmul.f32 %v1525, %v1527
  %v1534 = vperm.slane %v1437, 0
  %v1536 = vadd.f32 %v1529, %v1534
  %v1537 = vadd.f32 %v1530, %v1534
  %v1538 = vadd.f32 %v1531, %v1534
  %v1539 = vadd.f32 %v1532, %v1534
  %v1540 = vpack.c.bf16 %v1537, %v1536
  %v1541 = vpack.c.bf16 %v1539, %v1538
  %s1542 = scalar_lea.vmem %s11, 16
  %v1543 = vld [vmem:[%s1542] sm:$0xf]
  %v1544 = vld [vmem:[%s1542 + $0x4] sm:$0xf]
  %v1545 = vld [vmem:[%s1542 + $0x8] sm:$0xf]
  %v1546 = vld [vmem:[%s1542 + $0xc] sm:$0xf]
  %s1547 = scalar_lea.vmem %s12, 1
  %v1548 = vld [vmem:[%s1547] sm:$0x1]
  %v1550 = vperm.slane %v1548, 0
  %v1556 = vunpack.c.l.b16 %v1543
  %v1557 = vunpack.c.l.b16 %v1544
  %v1558 = vunpack.c.l.b16 %v1545
  %v1559 = vunpack.c.l.b16 %v1546
  %v1560 = vpack.c.b16 %v1557, %v1556
  %v1561 = vpack.c.b16 %v1559, %v1558
  %v1565 = vsel %vm80, %v1540, 0
  %v1568 = vsel %vm80, %v1541, 0
  %1570 = vmatpush.bf16.msra.mxu0 0
  %1571 = vmatpush.bf16.msra.mxu0 0
  %1572 = vmatpush.bf16.msra.mxu0 0
  %1573 = vmatpush.bf16.msra.mxu0 0
  %1574 = vmatpush.bf16.msra.mxu0 0
  %1575 = vmatpush.bf16.msra.mxu0 0
  %1576 = vmatpush.bf16.msra.mxu0 %v1561
  %1577 = vmatpush.bf16.msra.mxu0 %v1560
  %1578 = vmatmul.bf16.gmra.mxu0 %v1565
  %v1579 = vpop.f32.mrf.mxu0
  %v1580 = vadd.f32 %v1550, %v1579
  %v1581 = vpop.f32.mrf.mxu0
  %v1582 = vadd.f32 %v1550, %v1581
  %1583 = vmatmul.bf16.gmra.mxu0 %v1568
  %v1584 = vpop.f32.mrf.mxu0
  %v1585 = vadd.f32 %v1550, %v1584
  %v1586 = vpop.f32.mrf.mxu0
  %v1587 = vadd.f32 %v1550, %v1586
  %1588 = vdwg.mxu0
  %v1589 = vmul.f32 %v1580, %v1580
  %v1590 = vmul.f32 %v1582, %v1582
  %v1591 = vmul.f32 %v1585, %v1585
  %v1592 = vmul.f32 %v1587, %v1587
  %v1593 = vmul.f32 %v1580, %v1589
  %v1594 = vmul.f32 %v1582, %v1590
  %v1595 = vmul.f32 %v1585, %v1591
  %v1596 = vmul.f32 %v1587, %v1592
  %v1597 = vmul.f32 %v1593, 0.044715
  %v1598 = vmul.f32 %v1594, 0.044715
  %v1599 = vmul.f32 %v1595, 0.044715
  %v1600 = vmul.f32 %v1596, 0.044715
  %v1601 = vadd.f32 %v1580, %v1597
  %v1602 = vadd.f32 %v1582, %v1598
  %v1603 = vadd.f32 %v1585, %v1599
  %v1604 = vadd.f32 %v1587, %v1600
  %v1605 = vmul.f32 %v1601, 0.7978846
  %v1606 = vmul.f32 %v1602, 0.7978846
  %v1607 = vmul.f32 %v1603, 0.7978846
  %v1608 = vmul.f32 %v1604, 0.7978846
  %v1609 = vtanh.pop %v1605
  %v1610 = vtanh.pop %v1606
  %v1611 = vtanh.pop %v1607
  %v1612 = vtanh.pop %v1608
  %v1613 = vadd.f32 %v1609, 1.0
  %v1614 = vadd.f32 %v1610, 1.0
  %v1615 = vadd.f32 %v1611, 1.0
  %v1616 = vadd.f32 %v1612, 1.0
  %v1617 = vmul.f32 %v1613, 0.5
  %v1618 = vmul.f32 %v1614, 0.5
  %v1619 = vmul.f32 %v1615, 0.5
  %v1620 = vmul.f32 %v1616, 0.5
  %v1621 = vmul.f32 %v1580, %v1617
  %v1622 = vmul.f32 %v1582, %v1618
  %v1623 = vmul.f32 %v1585, %v1619
  %v1624 = vmul.f32 %v1587, %v1620
  %v1625 = vpack.c.bf16 %v1622, %v1621
  %v1626 = vpack.c.bf16 %v1624, %v1623
  %s1627 = scalar_lea.vmem %s13, 32
  %v1628 = vld [vmem:[%s1627] sm:$0xf]
  %v1629 = vld [vmem:[%s1627 + $0x4] sm:$0xf]
  %v1630 = vld [vmem:[%s1627 + $0x8] sm:$0xf]
  %v1631 = vld [vmem:[%s1627 + $0xc] sm:$0xf]
  %v1632 = vld [vmem:[%s1627 + $0x10] sm:$0xf]
  %v1633 = vld [vmem:[%s1627 + $0x14] sm:$0xf]
  %v1634 = vld [vmem:[%s1627 + $0x18] sm:$0xf]
  %v1635 = vld [vmem:[%s1627 + $0x1c] sm:$0xf]
  %s1636 = scalar_lea.vmem %s14, 1
  %v1637 = vld [vmem:[%s1636] sm:$0x1]
  %v1639 = vperm.slane %v1637, 0
  %v1649 = vunpack.c.l.b16 %v1628
  %v1650 = vunpack.c.l.b16 %v1629
  %v1651 = vunpack.c.l.b16 %v1630
  %v1652 = vunpack.c.l.b16 %v1631
  %v1653 = vunpack.c.l.b16 %v1632
  %v1654 = vunpack.c.l.b16 %v1633
  %v1655 = vunpack.c.l.b16 %v1634
  %v1656 = vunpack.c.l.b16 %v1635
  %v1657 = vpack.c.b16 %v1650, %v1649
  %v1658 = vpack.c.b16 %v1652, %v1651
  %v1659 = vpack.c.b16 %v1654, %v1653
  %v1660 = vpack.c.b16 %v1656, %v1655
  %v1666 = vsel %vm858, %v1625, 0
  %v1669 = vsel %vm858, %v1626, 0
  %1671 = vmatpush.bf16.msra.mxu0 0
  %1672 = vmatpush.bf16.msra.mxu0 0
  %1673 = vmatpush.bf16.msra.mxu0 0
  %1674 = vmatpush.bf16.msra.mxu0 0
  %1675 = vmatpush.bf16.msra.mxu0 %v1660
  %1676 = vmatpush.bf16.msra.mxu0 %v1659
  %1677 = vmatpush.bf16.msra.mxu0 %v1658
  %1678 = vmatpush.bf16.msra.mxu0 %v1657
  %1679 = vmatmul.bf16.gmra.mxu0 %v1666
  %v1680 = vpop.f32.mrf.mxu0
  %v1681 = vadd.f32 %v1639, %v1680
  %v1682 = vpop.f32.mrf.mxu0
  %v1683 = vadd.f32 %v1639, %v1682
  %1684 = vmatmul.bf16.gmra.mxu0 %v1669
  %v1685 = vpop.f32.mrf.mxu0
  %v1686 = vadd.f32 %v1639, %v1685
  %v1687 = vpop.f32.mrf.mxu0
  %v1688 = vadd.f32 %v1639, %v1687
  %1689 = vdwg.mxu0
  %v1690 = vadd.f32 %v1681, %v1536
  %v1691 = vadd.f32 %v1683, %v1537
  %v1692 = vadd.f32 %v1686, %v1538
  %v1693 = vadd.f32 %v1688, %v1539
  %s1694 = scalar_lea.vmem %s15, 1
  %v1695 = vld [vmem:[%s1694] sm:$0x1]
  %s1696 = scalar_lea.vmem %s16, 1
  %v1697 = vld [vmem:[%s1696] sm:$0x1]
  %v1698 = vsel %vm80, %v1690, 0.0
  %1699 = vadd.xlane.f32.xlu0 %v1698
  %v1700 = vpop.xlane.xlu0 %1699
  %v1701 = vsel %vm80, %v1691, 0.0
  %1702 = vadd.xlane.f32.xlu0 %v1701
  %v1703 = vpop.xlane.xlu0 %1702
  %v1704 = vsel %vm80, %v1692, 0.0
  %1705 = vadd.xlane.f32.xlu0 %v1704
  %v1706 = vpop.xlane.xlu0 %1705
  %v1707 = vsel %vm80, %v1693, 0.0
  %1708 = vadd.xlane.f32.xlu0 %v1707
  %v1709 = vpop.xlane.xlu0 %1708
  %v1710 = vmul.f32 %v1700, %v99
  %v1711 = vmul.f32 %v1703, %v99
  %v1712 = vmul.f32 %v1706, %v99
  %v1713 = vmul.f32 %v1709, %v99
  %v1714 = vsub.f32 %v1690, %v1710
  %v1715 = vsub.f32 %v1691, %v1711
  %v1716 = vsub.f32 %v1692, %v1712
  %v1717 = vsub.f32 %v1693, %v1713
  %v1718 = vmul.f32 %v1714, %v1714
  %v1719 = vmul.f32 %v1715, %v1715
  %v1720 = vmul.f32 %v1716, %v1716
  %v1721 = vmul.f32 %v1717, %v1717
  %v1722 = vsel %vm80, %v1718, 0.0
  %1723 = vadd.xlane.f32.xlu0 %v1722
  %v1724 = vpop.xlane.xlu0 %1723
  %v1725 = vsel %vm80, %v1719, 0.0
  %1726 = vadd.xlane.f32.xlu0 %v1725
  %v1727 = vpop.xlane.xlu0 %1726
  %v1728 = vsel %vm80, %v1720, 0.0
  %1729 = vadd.xlane.f32.xlu0 %v1728
  %v1730 = vpop.xlane.xlu0 %1729
  %v1731 = vsel %vm80, %v1721, 0.0
  %1732 = vadd.xlane.f32.xlu0 %v1731
  %v1733 = vpop.xlane.xlu0 %1732
  %v1734 = vmul.f32 %v1724, %v99
  %v1735 = vmul.f32 %v1727, %v99
  %v1736 = vmul.f32 %v1730, %v99
  %v1737 = vmul.f32 %v1733, %v99
  %v1738 = vadd.f32 %v1734, 1e-12
  %v1739 = vadd.f32 %v1735, 1e-12
  %v1740 = vadd.f32 %v1736, 1e-12
  %v1741 = vadd.f32 %v1737, 1e-12
  %v1742 = vrsqrt.pop %v1738
  %v1743 = vmul.f32 %v1742, %v1738
  %v1744 = vmul.f32 %v1743, %v1742
  %v1745 = vmul.f32 0.5, %v1744
  %v1746 = vsub.f32 1.5, %v1745
  %v1747 = vmul.f32 %v1742, %v1746
  %vm1748 = vweird.f32 %v1738
  %vm1749 = vweird.f32 %v1742
  %vm1750 = vmor %vm1748, %vm1749
  %v1751 = vsel %vm1750, %v1742, %v1747
  %v1752 = vrsqrt.pop %v1739
  %v1753 = vmul.f32 %v1752, %v1739
  %v1754 = vmul.f32 %v1753, %v1752
  %v1755 = vmul.f32 0.5, %v1754
  %v1756 = vsub.f32 1.5, %v1755
  %v1757 = vmul.f32 %v1752, %v1756
  %vm1758 = vweird.f32 %v1739
  %vm1759 = vweird.f32 %v1752
  %vm1760 = vmor %vm1758, %vm1759
  %v1761 = vsel %vm1760, %v1752, %v1757
  %v1762 = vrsqrt.pop %v1740
  %v1763 = vmul.f32 %v1762, %v1740
  %v1764 = vmul.f32 %v1763, %v1762
  %v1765 = vmul.f32 0.5, %v1764
  %v1766 = vsub.f32 1.5, %v1765
  %v1767 = vmul.f32 %v1762, %v1766
  %vm1768 = vweird.f32 %v1740
  %vm1769 = vweird.f32 %v1762
  %vm1770 = vmor %vm1768, %vm1769
  %v1771 = vsel %vm1770, %v1762, %v1767
  %v1772 = vrsqrt.pop %v1741
  %v1773 = vmul.f32 %v1772, %v1741
  %v1774 = vmul.f32 %v1773, %v1772
  %v1775 = vmul.f32 0.5, %v1774
  %v1776 = vsub.f32 1.5, %v1775
  %v1777 = vmul.f32 %v1772, %v1776
  %vm1778 = vweird.f32 %v1741
  %vm1779 = vweird.f32 %v1772
  %vm1780 = vmor %vm1778, %vm1779
  %v1781 = vsel %vm1780, %v1772, %v1777
  %v1782 = vmul.f32 %v1714, %v1751
  %v1783 = vmul.f32 %v1715, %v1761
  %v1784 = vmul.f32 %v1716, %v1771
  %v1785 = vmul.f32 %v1717, %v1781
  %v1787 = vperm.slane %v1695, 0
  %v1789 = vmul.f32 %v1782, %v1787
  %v1790 = vmul.f32 %v1783, %v1787
  %v1791 = vmul.f32 %v1784, %v1787
  %v1792 = vmul.f32 %v1785, %v1787
  %v1794 = vperm.slane %v1697, 0
  %v1796 = vadd.f32 %v1789, %v1794
  %v1797 = vadd.f32 %v1790, %v1794
  %v1798 = vadd.f32 %v1791, %v1794
  %v1799 = vadd.f32 %v1792, %v1794
  %v1800 = vld [vmem:[%s2] sm:$0xf]
  %v1802 = vsel %vm80, %v1800, 0
  %1804 = vmatpush.msra.mxu0 0.0
  %1805 = vmatpush.msra.mxu0 0.0
  %1806 = vmatpush.msra.mxu0 0.0
  %1807 = vmatpush.msra.mxu0 0.0
  %1808 = vmatpush.msra.mxu0 0.0
  %1809 = vmatpush.msra.mxu0 0.0
  %1810 = vmatpush.msra.mxu0 0.0
  %1811 = vmatpush.msra.mxu0 0.0
  %1812 = vmatpush.msra.mxu0 0.0
  %1813 = vmatpush.msra.mxu0 0.0
  %1814 = vmatpush.msra.mxu0 0.0
  %1815 = vmatpush.msra.mxu0 0.0
  %1816 = vmatpush.msra.mxu0 %v1799
  %1817 = vmatpush.msra.mxu0 %v1798
  %1818 = vmatpush.msra.mxu0 %v1797
  %1819 = vmatpush.msra.mxu0 %v1796
  %1820 = vmatmul.f32.gmra.mxu0 %v1802
  %v1821 = vpop.f32.mrf.mxu0
  %v1822 = vadd.f32 0.0, %v1821
  %1823 = vdwg.mxu0
  %v1824 = vpack.c.bf16 %v1822, %v1822
  %v1825 = vld [vmem:[%s17] sm:$0xf]
  %v1826 = vld [vmem:[%s17 + $0x4] sm:$0xf]
  %v1827 = vld [vmem:[%s17 + $0x8] sm:$0xf]
  %v1828 = vld [vmem:[%s17 + $0xc] sm:$0xf]
  %v1829 = vld [vmem:[%s18] sm:$0x1]
  %v1831 = vperm.slane %v1829, 0
  %v1837 = vunpack.c.l.b16 %v1825
  %v1838 = vunpack.c.l.b16 %v1826
  %v1839 = vunpack.c.l.b16 %v1827
  %v1840 = vunpack.c.l.b16 %v1828
  %v1841 = vpack.c.b16 %v1838, %v1837
  %v1842 = vpack.c.b16 %v1840, %v1839
  %v1846 = vsel %vm80, %v1824, 0
  %1848 = vmatpush.bf16.msra.mxu0 0
  %1849 = vmatpush.bf16.msra.mxu0 0
  %1850 = vmatpush.bf16.msra.mxu0 0
  %1851 = vmatpush.bf16.msra.mxu0 0
  %1852 = vmatpush.bf16.msra.mxu0 0
  %1853 = vmatpush.bf16.msra.mxu0 0
  %1854 = vmatpush.bf16.msra.mxu0 %v1842
  %1855 = vmatpush.bf16.msra.mxu0 %v1841
  %1856 = vmatmul.bf16.gmra.mxu0 %v1846
  %v1857 = vpop.f32.mrf.mxu0
  %v1858 = vadd.f32 %v1831, %v1857
  %v1859 = vpop.f32.mrf.mxu0
  %1860 = vdwg.mxu0
  %v1861 = vtanh.pop %v1858
  %v1862 = vld [vmem:[%s19] sm:$0xff]
  %v1863 = vld [vmem:[%s19 + $0x8] sm:$0xff]
  %v1864 = vld [vmem:[%s19 + $0x10] sm:$0xff]
  %v1865 = vld [vmem:[%s19 + $0x18] sm:$0xff]
  %v1866 = vld [vmem:[%s20] sm:$0xff]
  %v1867 = vld [vmem:[%s20 + $0x8] sm:$0xff]
  %v1868 = vld [vmem:[%s20 + $0x10] sm:$0xff]
  %v1869 = vld [vmem:[%s20 + $0x18] sm:$0xff]
  %v1871 = vrot.slane %v1861, 2
  %v1872 = vsel %vm80, %v1871, 0
  %1874 = vmatpush.msra.mxu0 0.0
  %1875 = vmatpush.msra.mxu0 0.0
  %1876 = vmatpush.msra.mxu0 0.0
  %1877 = vmatpush.msra.mxu0 0.0
  %1878 = vmatpush.msra.mxu0 0.0
  %1879 = vmatpush.msra.mxu0 0.0
  %1880 = vmatpush.msra.mxu0 0.0
  %1881 = vmatpush.msra.mxu0 0.0
  %1882 = vmatpush.msra.mxu0 0.0
  %1883 = vmatpush.msra.mxu0 0.0
  %1884 = vmatpush.msra.mxu0 0.0
  %1885 = vmatpush.msra.mxu0 0.0
  %1886 = vmatpush.msra.mxu0 %v1869
  %1887 = vmatpush.msra.mxu0 %v1868
  %1888 = vmatpush.msra.mxu0 %v1867
  %1889 = vmatpush.msra.mxu0 %v1866
  %1890 = vmatmul.f32.gmra.mxu0 %v1872
  %v1891 = vpop.f32.mrf.mxu0
  %v1892 = vadd.f32 0.0, %v1891
  %1893 = vdwg.mxu0
  %v1894 = vsel %vm80, %v1861, 0
  %1896 = vmatpush.msra.mxu0 0.0
  %1897 = vmatpush.msra.mxu0 0.0
  %1898 = vmatpush.msra.mxu0 0.0
  %1899 = vmatpush.msra.mxu0 0.0
  %1900 = vmatpush.msra.mxu0 0.0
  %1901 = vmatpush.msra.mxu0 0.0
  %1902 = vmatpush.msra.mxu0 0.0
  %1903 = vmatpush.msra.mxu0 0.0
  %1904 = vmatpush.msra.mxu0 0.0
  %1905 = vmatpush.msra.mxu0 0.0
  %1906 = vmatpush.msra.mxu0 0.0
  %1907 = vmatpush.msra.mxu0 0.0
  %1908 = vmatpush.msra.mxu0 %v1865
  %1909 = vmatpush.msra.mxu0 %v1864
  %1910 = vmatpush.msra.mxu0 %v1863
  %1911 = vmatpush.msra.mxu0 %v1862
  %1912 = vmatmul.f32.gmra.mxu0 %v1894
  %v1913 = vpop.f32.mrf.mxu0
  %v1914 = vadd.f32 %v1892, %v1913
  %1915 = vdwg.mxu0
  %v1916 = vld [vmem:[#allocation2] sm:$0x1]
  %v1918 = vperm.slane %v1916, 0
  %v1920 = vadd.f32 %v1914, %v1918
  %vm1921 = vcmask 1024
  %1922 = vst.msk [vmem:[%s22] sm:$0x3] %vm1921, %v1920
  // Predicated region
  $region90: #{pairwise_bert_forward.1} parent=0 // pred_check
    _
  $region91: #{pairwise_bert_forward.1} parent=0 // pred_check_branch
    %1924 = sbr.rel (0) target = $region93
  $region92: #{pairwise_bert_forward.1} parent=0 // pred_region
    _
  $region93: #{pairwise_bert_forward.1} parent=0 // pred_fallthru
    _
  // Predicated region
  $region94: #{pairwise_bert_forward.1} parent=0 // pred_check
    _
  $region95: #{pairwise_bert_forward.1} parent=0 // pred_check_branch
    %1926 = sbr.rel (0) target = $region97
  $region96: #{pairwise_bert_forward.1} parent=0 // pred_region
    _
  $region97: #{pairwise_bert_forward.1} parent=0 // pred_fallthru
    _

</llo_original>
